<compile_context>
chip_gen: v7x
topology: tpu7x:2x2x1
jax: 0.10.0
libtpu: 0.0.40
codegen_flags: <defaults>
</compile_context>

<pallas_src>
import jax
import jax.numpy as jnp
import numpy as np
from jax.experimental import pallas as pl
from jax.experimental.pallas import tpu as pltpu

NUM_FEATURES = 8
NUM_CLASSES = 4
HIDDEN = 32
BN_EPS = 1e-5
CLASS_PAD = 128          # pad the 4 classes up to a full 128-lane vreg

# MXU input dtype.  On v6e / v7x set this to jnp.bfloat16 for higher MXU
# throughput (accumulation stays f32 via preferred_element_type).  Left at f32
# here so the check against the f32 reference stays tight -- at these shapes
# the kernel is copy/XLU bound, not MXU bound.  All elementwise / BN math is
# f32 regardless (v5e has no bf16 VPU/EUP path).
MXU_DTYPE = jnp.float32


def _round8(v):
    return ((v + 7) // 8) * 8


# ------------------------------- kernel helpers --------------------------------


def _conv_relu_bn(x, w_aug, mask, dilation, k_taps, rows_out, inv_count):
    """One TDNN block: dilated Conv1d (bias folded in) -> ReLU -> BatchNorm1d.

    x        : [rows_in, Cin]     flat (batch*time) rows, channels on lanes
    w_aug    : [K*Cin + 1, Cout]  taps flattened on the contraction dim,
                                  last row = conv bias (ones-column fold)
    mask     : [rows_out, 1]      1.0 on real (n, t) rows, 0.0 on pad/garbage
    inv_count: python float, 1 / (N * T_out) for the BN statistics
    """
    # im2col: stage the K shifted views once per layer into a single buffer so
    # the conv becomes ONE wide MXU contraction (depth 25 / 161) instead of K
    # narrow matmuls + K accumulate adds.
    cols = [x[k * dilation:k * dilation + rows_out, :] for k in range(k_taps)]
    cols.append(jnp.ones((rows_out, 1), jnp.float32))        # folds the bias
    xc = jnp.concatenate(cols, axis=-1)                       # [rows, K*Cin+1]
    y = jnp.dot(xc.astype(MXU_DTYPE), w_aug.astype(MXU_DTYPE),
                preferred_element_type=jnp.float32)           # [rows, Cout]

    # Fused ReLU + training-mode BN (affine=False): single data pass producing
    # sum and sum-of-squares; garbage rows are masked out of the statistics.
    y = jnp.maximum(y, 0.0)
    ym = y * mask
    s = jnp.sum(ym, axis=0, keepdims=True)                    # [1, Cout]
    ss = jnp.sum(ym * y, axis=0, keepdims=True)               # [1, Cout]
    mean = s * inv_count
    var = ss * inv_count - mean * mean                        # biased variance
    return (y - mean) * jax.lax.rsqrt(jnp.maximum(var, 0.0) + BN_EPS)


# ------------------------------- Pallas wrapper --------------------------------


def tdnn_forward(x, params):
    n, t, f = x.shape
    t1, t2, t3 = t - 2, t - 10, t - 26          # valid output length per layer
    assert t3 >= 1, "sequence too short for the 27-frame receptive field"

    # Row budget per layer: enough rows for every valid (n, t) position
    # (row = n*T + t) plus the taps' look-ahead, rounded to sublane multiples.
    rows3 = _round8((n - 1) * t + t3)
    rows2 = _round8(max(rows3 + 16, (n - 1) * t + t2))
    rows1 = _round8(max(rows2 + 8, (n - 1) * t + t1))
    rows0 = _round8(max(rows1 + 2, n * t))

    # ---- host-side (XLA) prep: flat input, folded weights, masks ------------
    x_flat = jnp.pad(x.reshape(n * t, f).astype(jnp.float32),
                     ((0, rows0 - n * t), (0, 0)))

    def fold(w, b):      # [K,Cin,Cout],[Cout] -> [K*Cin+1, Cout], bias row last
        k, cin, cout = w.shape
        return jnp.concatenate([w.reshape(k * cin, cout), b.reshape(1, cout)], 0)

    w1a = fold(params["w1"], params["b1"])
    w2a = fold(params["w2"], params["b2"])
    w3a = fold(params["w3"], params["b3"])

    # Lane-dense classifier: pad 4 classes -> 128 lanes; padded logits get a
    # -1e30 bias so log_softmax over 128 lanes == log_softmax over the real 4.
    wl_pad = jnp.zeros((HIDDEN, CLASS_PAD),
                       jnp.float32).at[:, :NUM_CLASSES].set(params["wl"])
    bl_pad = jnp.full((1, CLASS_PAD), -1e30,
                      jnp.float32).at[0, :NUM_CLASSES].set(params["bl"])

    def row_mask(rows, t_valid):
        r = jnp.arange(rows)
        ok = ((r // t) < n) & ((r % t) < t_valid)
        return ok.astype(jnp.float32)[:, None]                # [rows, 1]

    m1, m2, m3 = row_mask(rows1, t1), row_mask(rows2, t2), row_mask(rows3, t3)
    inv1, inv2, inv3 = 1.0 / (n * t1), 1.0 / (n * t2), 1.0 / (n * t3)

    # ---- the kernel ----------------------------------------------------------
    def kernel(x_ref, w1_ref, w2_ref, w3_ref, wl_ref, bl_ref,
               m1_ref, m2_ref, m3_ref, out_ref):
        y = _conv_relu_bn(x_ref[...], w1_ref[...], m1_ref[...], 1, 3, rows1, inv1)
        y = _conv_relu_bn(y, w2_ref[...], m2_ref[...], 2, 5, rows2, inv2)
        y = _conv_relu_bn(y, w3_ref[...], m3_ref[...], 4, 5, rows3, inv3)

        logits = jnp.dot(y.astype(MXU_DTYPE), wl_ref[...].astype(MXU_DTYPE),
                         preferred_element_type=jnp.float32) + bl_ref[...]
        mx = jnp.max(logits, axis=-1, keepdims=True)
        z = logits - mx
        lse = jnp.log(jnp.sum(jnp.exp(z), axis=-1, keepdims=True))
        out_ref[...] = z - lse                                 # [rows3, 128]

    vmem = pl.BlockSpec(memory_space=pltpu.MemorySpace.VMEM)
    out = pl.pallas_call(
        kernel,
        out_shape=jax.ShapeDtypeStruct((rows3, CLASS_PAD), jnp.float32),
        in_specs=[vmem] * 9,
        out_specs=vmem,
    )(x_flat, w1a, w2a, w3a, wl_pad, bl_pad, m1, m2, m3)

    # Slice valid rows / real classes back out: [N, T-26, NUM_CLASSES].
    return jnp.stack([out[i * t:i * t + t3, :NUM_CLASSES] for i in range(n)],
                     axis=0)


# ------------------------------- params / reference ----------------------------


def init_params(key):
    ks = jax.random.split(key, 8)

    def u(k, shape, fan_in):
        bound = 1.0 / np.sqrt(fan_in)
        return jax.random.uniform(k, shape, jnp.float32, -bound, bound)

    return dict(
        w1=u(ks[0], (3, NUM_FEATURES, HIDDEN), NUM_FEATURES * 3),
        b1=u(ks[1], (HIDDEN,), NUM_FEATURES * 3),
        w2=u(ks[2], (5, HIDDEN, HIDDEN), HIDDEN * 5),
        b2=u(ks[3], (HIDDEN,), HIDDEN * 5),
        w3=u(ks[4], (5, HIDDEN, HIDDEN), HIDDEN * 5),
        b3=u(ks[5], (HIDDEN,), HIDDEN * 5),
        wl=u(ks[6], (HIDDEN, NUM_CLASSES), HIDDEN),
        bl=u(ks[7], (NUM_CLASSES,), HIDDEN),
    )


def _ref_conv(x, w, b, dilation):
    k_taps = w.shape[0]
    t_out = x.shape[1] - (k_taps - 1) * dilation
    acc = jnp.zeros((x.shape[0], t_out, w.shape[2]), jnp.float32)
    for k in range(k_taps):
        acc = acc + jnp.einsum("ntc,co->nto",
                               x[:, k * dilation:k * dilation + t_out, :], w[k])
    return acc + b


def _ref_relu_bn(y):
    y = jnp.maximum(y, 0.0)
    mean = jnp.mean(y, axis=(0, 1), keepdims=True)
    var = jnp.mean((y - mean) ** 2, axis=(0, 1), keepdims=True)
    return (y - mean) * jax.lax.rsqrt(var + BN_EPS)


def reference(x, p):
    y = _ref_relu_bn(_ref_conv(x, p["w1"], p["b1"], 1))
    y = _ref_relu_bn(_ref_conv(y, p["w2"], p["b2"], 2))
    y = _ref_relu_bn(_ref_conv(y, p["w3"], p["b3"], 4))
    logits = jnp.einsum("ntc,co->nto", y, p["wl"]) + p["bl"]
    return jax.nn.log_softmax(logits, axis=-1)


# ------------------------------------ driver -----------------------------------


if __name__ == "__main__":
    key = jax.random.PRNGKey(0)
    k_x, k_p = jax.random.split(key)

    N, T = 2, 40                      # T must be >= 27 (total receptive field)
    x = jax.random.normal(k_x, (N, T, NUM_FEATURES), jnp.float32)
    params = init_params(k_p)

    out = jax.block_until_ready(tdnn_forward(x, params))

    assert out.shape == (N, T - 26, NUM_CLASSES), out.shape
    ref = jax.block_until_ready(reference(x, params))
    np.testing.assert_allclose(np.asarray(out), np.asarray(ref),
                               rtol=2e-3, atol=2e-3)
    print("KERNEL_OK")
</pallas_src>

<mosaic_0001>
module attributes {stable_mosaic.version = 11 : i64} {
  func.func @kernel(%arg0: memref<88x8xf32, #tpu.memory_space<vmem>>, %arg1: memref<25x32xf32, #tpu.memory_space<vmem>>, %arg2: memref<161x32xf32, #tpu.memory_space<vmem>>, %arg3: memref<161x32xf32, #tpu.memory_space<vmem>>, %arg4: memref<32x128xf32, #tpu.memory_space<vmem>>, %arg5: memref<1x128xf32, #tpu.memory_space<vmem>>, %arg6: memref<80x1xf32, #tpu.memory_space<vmem>>, %arg7: memref<72x1xf32, #tpu.memory_space<vmem>>, %arg8: memref<56x1xf32, #tpu.memory_space<vmem>>, %arg9: memref<56x128xf32, #tpu.memory_space<vmem>>) attributes {dimension_semantics = [], scalar_prefetch = 0 : i64, scratch_operands = 0 : i64, tpu.core_type = #tpu.core_type<tc>} {
    %c0 = arith.constant 0 : index
    %c0_0 = arith.constant 0 : index
    %0 = vector.load %arg0[%c0, %c0_0] : memref<88x8xf32, #tpu.memory_space<vmem>>, vector<88x8xf32>
    %c0_1 = arith.constant 0 : index
    %c0_2 = arith.constant 0 : index
    %1 = vector.load %arg1[%c0_1, %c0_2] : memref<25x32xf32, #tpu.memory_space<vmem>>, vector<25x32xf32>
    %c0_3 = arith.constant 0 : index
    %c0_4 = arith.constant 0 : index
    %2 = vector.load %arg6[%c0_3, %c0_4] : memref<80x1xf32, #tpu.memory_space<vmem>>, vector<80x1xf32>
    %3 = vector.extract_strided_slice %0 {offsets = [0, 0], sizes = [80, 8], strides = [1, 1]} : vector<88x8xf32> to vector<80x8xf32>
    %4 = vector.extract_strided_slice %0 {offsets = [1, 0], sizes = [80, 8], strides = [1, 1]} : vector<88x8xf32> to vector<80x8xf32>
    %5 = vector.extract_strided_slice %0 {offsets = [2, 0], sizes = [80, 8], strides = [1, 1]} : vector<88x8xf32> to vector<80x8xf32>
    %cst = arith.constant 1.000000e+00 : f32
    %6 = vector.broadcast %cst : f32 to vector<80x1xf32>
    %7 = tpu.concatenate %3, %4, %5, %6 in 1 : vector<80x8xf32>, vector<80x8xf32>, vector<80x8xf32>, vector<80x1xf32> -> vector<80x25xf32>
    %cst_5 = arith.constant dense<0.000000e+00> : vector<80x32xf32>
    %8 = tpu.matmul %7, %1, %cst_5 {dimension_numbers = #tpu.dot_dimension_numbers<[1], [0], [0], [1], [0, 0, 1, 1], [], []>} : vector<80x25xf32>, vector<25x32xf32>, vector<80x32xf32> -> vector<80x32xf32>
    %cst_6 = arith.constant 0.000000e+00 : f32
    %9 = vector.broadcast %cst_6 : f32 to vector<80x32xf32>
    %10 = arith.maximumf %8, %9 : vector<80x32xf32>
    %11 = vector.broadcast %2 : vector<80x1xf32> to vector<80x32xf32>
    %12 = arith.mulf %10, %11 : vector<80x32xf32>
    %cst_7 = arith.constant dense<0.000000e+00> : vector<32xf32>
    %13 = vector.multi_reduction <add>, %12, %cst_7 [0] : vector<80x32xf32> to vector<32xf32>
    %14 = vector.shape_cast %13 : vector<32xf32> to vector<1x32xf32>
    %15 = arith.mulf %12, %10 : vector<80x32xf32>
    %cst_8 = arith.constant dense<0.000000e+00> : vector<32xf32>
    %16 = vector.multi_reduction <add>, %15, %cst_8 [0] : vector<80x32xf32> to vector<32xf32>
    %17 = vector.shape_cast %16 : vector<32xf32> to vector<1x32xf32>
    %cst_9 = arith.constant 0.0131578948 : f32
    %18 = vector.broadcast %cst_9 : f32 to vector<1x32xf32>
    %19 = arith.mulf %14, %18 : vector<1x32xf32>
    %cst_10 = arith.constant 0.0131578948 : f32
    %20 = vector.broadcast %cst_10 : f32 to vector<1x32xf32>
    %21 = arith.mulf %17, %20 : vector<1x32xf32>
    %22 = arith.mulf %19, %19 : vector<1x32xf32>
    %23 = arith.subf %21, %22 : vector<1x32xf32>
    %24 = vector.broadcast %19 : vector<1x32xf32> to vector<80x32xf32>
    %25 = arith.subf %10, %24 : vector<80x32xf32>
    %cst_11 = arith.constant 0.000000e+00 : f32
    %26 = vector.broadcast %cst_11 : f32 to vector<1x32xf32>
    %27 = arith.maximumf %23, %26 : vector<1x32xf32>
    %cst_12 = arith.constant 9.99999974E-6 : f32
    %28 = vector.broadcast %cst_12 : f32 to vector<1x32xf32>
    %29 = arith.addf %27, %28 : vector<1x32xf32>
    %30 = math.rsqrt %29 : vector<1x32xf32>
    %31 = vector.broadcast %30 : vector<1x32xf32> to vector<80x32xf32>
    %32 = arith.mulf %25, %31 : vector<80x32xf32>
    %c0_13 = arith.constant 0 : index
    %c0_14 = arith.constant 0 : index
    %33 = vector.load %arg2[%c0_13, %c0_14] : memref<161x32xf32, #tpu.memory_space<vmem>>, vector<161x32xf32>
    %c0_15 = arith.constant 0 : index
    %c0_16 = arith.constant 0 : index
    %34 = vector.load %arg7[%c0_15, %c0_16] : memref<72x1xf32, #tpu.memory_space<vmem>>, vector<72x1xf32>
    %35 = vector.extract_strided_slice %32 {offsets = [0, 0], sizes = [72, 32], strides = [1, 1]} : vector<80x32xf32> to vector<72x32xf32>
    %36 = vector.extract_strided_slice %32 {offsets = [2, 0], sizes = [72, 32], strides = [1, 1]} : vector<80x32xf32> to vector<72x32xf32>
    %37 = vector.extract_strided_slice %32 {offsets = [4, 0], sizes = [72, 32], strides = [1, 1]} : vector<80x32xf32> to vector<72x32xf32>
    %38 = vector.extract_strided_slice %32 {offsets = [6, 0], sizes = [72, 32], strides = [1, 1]} : vector<80x32xf32> to vector<72x32xf32>
    %39 = vector.extract_strided_slice %32 {offsets = [8, 0], sizes = [72, 32], strides = [1, 1]} : vector<80x32xf32> to vector<72x32xf32>
    %cst_17 = arith.constant 1.000000e+00 : f32
    %40 = vector.broadcast %cst_17 : f32 to vector<72x1xf32>
    %41 = tpu.concatenate %35, %36, %37, %38, %39, %40 in 1 : vector<72x32xf32>, vector<72x32xf32>, vector<72x32xf32>, vector<72x32xf32>, vector<72x32xf32>, vector<72x1xf32> -> vector<72x161xf32>
    %cst_18 = arith.constant dense<0.000000e+00> : vector<72x32xf32>
    %42 = tpu.matmul %41, %33, %cst_18 {dimension_numbers = #tpu.dot_dimension_numbers<[1], [0], [0], [1], [0, 0, 1, 1], [], []>} : vector<72x161xf32>, vector<161x32xf32>, vector<72x32xf32> -> vector<72x32xf32>
    %cst_19 = arith.constant 0.000000e+00 : f32
    %43 = vector.broadcast %cst_19 : f32 to vector<72x32xf32>
    %44 = arith.maximumf %42, %43 : vector<72x32xf32>
    %45 = vector.broadcast %34 : vector<72x1xf32> to vector<72x32xf32>
    %46 = arith.mulf %44, %45 : vector<72x32xf32>
    %cst_20 = arith.constant dense<0.000000e+00> : vector<32xf32>
    %47 = vector.multi_reduction <add>, %46, %cst_20 [0] : vector<72x32xf32> to vector<32xf32>
    %48 = vector.shape_cast %47 : vector<32xf32> to vector<1x32xf32>
    %49 = arith.mulf %46, %44 : vector<72x32xf32>
    %cst_21 = arith.constant dense<0.000000e+00> : vector<32xf32>
    %50 = vector.multi_reduction <add>, %49, %cst_21 [0] : vector<72x32xf32> to vector<32xf32>
    %51 = vector.shape_cast %50 : vector<32xf32> to vector<1x32xf32>
    %cst_22 = arith.constant 0.0166666675 : f32
    %52 = vector.broadcast %cst_22 : f32 to vector<1x32xf32>
    %53 = arith.mulf %48, %52 : vector<1x32xf32>
    %cst_23 = arith.constant 0.0166666675 : f32
    %54 = vector.broadcast %cst_23 : f32 to vector<1x32xf32>
    %55 = arith.mulf %51, %54 : vector<1x32xf32>
    %56 = arith.mulf %53, %53 : vector<1x32xf32>
    %57 = arith.subf %55, %56 : vector<1x32xf32>
    %58 = vector.broadcast %53 : vector<1x32xf32> to vector<72x32xf32>
    %59 = arith.subf %44, %58 : vector<72x32xf32>
    %cst_24 = arith.constant 0.000000e+00 : f32
    %60 = vector.broadcast %cst_24 : f32 to vector<1x32xf32>
    %61 = arith.maximumf %57, %60 : vector<1x32xf32>
    %cst_25 = arith.constant 9.99999974E-6 : f32
    %62 = vector.broadcast %cst_25 : f32 to vector<1x32xf32>
    %63 = arith.addf %61, %62 : vector<1x32xf32>
    %64 = math.rsqrt %63 : vector<1x32xf32>
    %65 = vector.broadcast %64 : vector<1x32xf32> to vector<72x32xf32>
    %66 = arith.mulf %59, %65 : vector<72x32xf32>
    %c0_26 = arith.constant 0 : index
    %c0_27 = arith.constant 0 : index
    %67 = vector.load %arg3[%c0_26, %c0_27] : memref<161x32xf32, #tpu.memory_space<vmem>>, vector<161x32xf32>
    %c0_28 = arith.constant 0 : index
    %c0_29 = arith.constant 0 : index
    %68 = vector.load %arg8[%c0_28, %c0_29] : memref<56x1xf32, #tpu.memory_space<vmem>>, vector<56x1xf32>
    %69 = vector.extract_strided_slice %66 {offsets = [0, 0], sizes = [56, 32], strides = [1, 1]} : vector<72x32xf32> to vector<56x32xf32>
    %70 = vector.extract_strided_slice %66 {offsets = [4, 0], sizes = [56, 32], strides = [1, 1]} : vector<72x32xf32> to vector<56x32xf32>
    %71 = vector.extract_strided_slice %66 {offsets = [8, 0], sizes = [56, 32], strides = [1, 1]} : vector<72x32xf32> to vector<56x32xf32>
    %72 = vector.extract_strided_slice %66 {offsets = [12, 0], sizes = [56, 32], strides = [1, 1]} : vector<72x32xf32> to vector<56x32xf32>
    %73 = vector.extract_strided_slice %66 {offsets = [16, 0], sizes = [56, 32], strides = [1, 1]} : vector<72x32xf32> to vector<56x32xf32>
    %cst_30 = arith.constant 1.000000e+00 : f32
    %74 = vector.broadcast %cst_30 : f32 to vector<56x1xf32>
    %75 = tpu.concatenate %69, %70, %71, %72, %73, %74 in 1 : vector<56x32xf32>, vector<56x32xf32>, vector<56x32xf32>, vector<56x32xf32>, vector<56x32xf32>, vector<56x1xf32> -> vector<56x161xf32>
    %cst_31 = arith.constant dense<0.000000e+00> : vector<56x32xf32>
    %76 = tpu.matmul %75, %67, %cst_31 {dimension_numbers = #tpu.dot_dimension_numbers<[1], [0], [0], [1], [0, 0, 1, 1], [], []>} : vector<56x161xf32>, vector<161x32xf32>, vector<56x32xf32> -> vector<56x32xf32>
    %cst_32 = arith.constant 0.000000e+00 : f32
    %77 = vector.broadcast %cst_32 : f32 to vector<56x32xf32>
    %78 = arith.maximumf %76, %77 : vector<56x32xf32>
    %79 = vector.broadcast %68 : vector<56x1xf32> to vector<56x32xf32>
    %80 = arith.mulf %78, %79 : vector<56x32xf32>
    %cst_33 = arith.constant dense<0.000000e+00> : vector<32xf32>
    %81 = vector.multi_reduction <add>, %80, %cst_33 [0] : vector<56x32xf32> to vector<32xf32>
    %82 = vector.shape_cast %81 : vector<32xf32> to vector<1x32xf32>
    %83 = arith.mulf %80, %78 : vector<56x32xf32>
    %cst_34 = arith.constant dense<0.000000e+00> : vector<32xf32>
    %84 = vector.multi_reduction <add>, %83, %cst_34 [0] : vector<56x32xf32> to vector<32xf32>
    %85 = vector.shape_cast %84 : vector<32xf32> to vector<1x32xf32>
    %cst_35 = arith.constant 0.0357142873 : f32
    %86 = vector.broadcast %cst_35 : f32 to vector<1x32xf32>
    %87 = arith.mulf %82, %86 : vector<1x32xf32>
    %cst_36 = arith.constant 0.0357142873 : f32
    %88 = vector.broadcast %cst_36 : f32 to vector<1x32xf32>
    %89 = arith.mulf %85, %88 : vector<1x32xf32>
    %90 = arith.mulf %87, %87 : vector<1x32xf32>
    %91 = arith.subf %89, %90 : vector<1x32xf32>
    %92 = vector.broadcast %87 : vector<1x32xf32> to vector<56x32xf32>
    %93 = arith.subf %78, %92 : vector<56x32xf32>
    %cst_37 = arith.constant 0.000000e+00 : f32
    %94 = vector.broadcast %cst_37 : f32 to vector<1x32xf32>
    %95 = arith.maximumf %91, %94 : vector<1x32xf32>
    %cst_38 = arith.constant 9.99999974E-6 : f32
    %96 = vector.broadcast %cst_38 : f32 to vector<1x32xf32>
    %97 = arith.addf %95, %96 : vector<1x32xf32>
    %98 = math.rsqrt %97 : vector<1x32xf32>
    %99 = vector.broadcast %98 : vector<1x32xf32> to vector<56x32xf32>
    %100 = arith.mulf %93, %99 : vector<56x32xf32>
    %c0_39 = arith.constant 0 : index
    %c0_40 = arith.constant 0 : index
    %101 = vector.load %arg4[%c0_39, %c0_40] : memref<32x128xf32, #tpu.memory_space<vmem>>, vector<32x128xf32>
    %cst_41 = arith.constant dense<0.000000e+00> : vector<56x128xf32>
    %102 = tpu.matmul %100, %101, %cst_41 {dimension_numbers = #tpu.dot_dimension_numbers<[1], [0], [0], [1], [0, 0, 1, 1], [], []>} : vector<56x32xf32>, vector<32x128xf32>, vector<56x128xf32> -> vector<56x128xf32>
    %c0_42 = arith.constant 0 : index
    %c0_43 = arith.constant 0 : index
    %103 = vector.load %arg5[%c0_42, %c0_43] : memref<1x128xf32, #tpu.memory_space<vmem>>, vector<1x128xf32>
    %104 = vector.broadcast %103 : vector<1x128xf32> to vector<56x128xf32>
    %105 = arith.addf %102, %104 : vector<56x128xf32>
    %cst_44 = arith.constant dense<0xFF800000> : vector<56xf32>
    %106 = vector.multi_reduction <maximumf>, %105, %cst_44 [1] : vector<56x128xf32> to vector<56xf32>
    %107 = vector.shape_cast %106 : vector<56xf32> to vector<56x1xf32>
    %108 = vector.broadcast %107 : vector<56x1xf32> to vector<56x128xf32>
    %109 = arith.subf %105, %108 : vector<56x128xf32>
    %110 = math.exp %109 : vector<56x128xf32>
    %cst_45 = arith.constant dense<0.000000e+00> : vector<56xf32>
    %111 = vector.multi_reduction <add>, %110, %cst_45 [1] : vector<56x128xf32> to vector<56xf32>
    %112 = vector.shape_cast %111 : vector<56xf32> to vector<56x1xf32>
    %113 = math.log %112 : vector<56x1xf32>
    %114 = vector.broadcast %113 : vector<56x1xf32> to vector<56x128xf32>
    %115 = arith.subf %109, %114 : vector<56x128xf32>
    %c0_46 = arith.constant 0 : index
    %c0_47 = arith.constant 0 : index
    %116 = vector.load %arg9[%c0_46, %c0_47] : memref<56x128xf32, #tpu.memory_space<vmem>>, vector<56x128xf32>
    tpu.vector_store %arg9[%c0_46, %c0_47], %115 {strides = array<i32>} : memref<56x128xf32, #tpu.memory_space<vmem>>, vector<56x128xf32>,
    return
  }
}

</mosaic_0001>

<llo_original>
// kernel: tpu_custom_call.1
$region0: #{tpu_custom_call.1}
  #allocation0 [shape = 'u32[]', space=smem, size = 0x4, offset = 0x4, fixed_abs, tag = 'smem constant byte address 0x4 - core index']
  #allocation1 [shape = 'u32[144,128]{1,0:T(1,128)}', space=vmem, size = 0x12000, scoped, tag = 'internal scratch']
  %s0 = inlined_call_operand.vmem [shape: f32[88,8], index: 0, kind: input, shape index: {}]
  %s1 = inlined_call_operand.vmem [shape: f32[25,32], index: 1, kind: input, shape index: {}]
  %s2 = inlined_call_operand.vmem [shape: f32[161,32], index: 2, kind: input, shape index: {}]
  %s3 = inlined_call_operand.vmem [shape: f32[161,32], index: 3, kind: input, shape index: {}]
  %s4 = inlined_call_operand.vmem [shape: f32[32,128], index: 4, kind: input, shape index: {}]
  %s5 = inlined_call_operand.vmem [shape: f32[1,128], index: 5, kind: input, shape index: {}]
  %s6 = inlined_call_operand.vmem [shape: f32[80,1], index: 6, kind: input, shape index: {}]
  %s7 = inlined_call_operand.vmem [shape: f32[72,1], index: 7, kind: input, shape index: {}]
  %s8 = inlined_call_operand.vmem [shape: f32[56,1], index: 8, kind: input, shape index: {}]
  %s9 = inlined_call_operand.hbm [shape: f32[56,128], index: 9, kind: output, shape index: {}]
  %s10 = sld [smem:[#allocation0]]
  $region46: #{tpu_custom_call.1} parent=0
    _
  %s12 = ssub.s32 1, %s10
  %s13 = scalar_select 0, %s12, %s10
  $region1: #{tpu_custom_call.1} parent=0
    #allocation2 [shape = 'u8[28672]{0}', space=vmem, size = 0x7000, scoped, tag = 'output window, operand 0, single buffered']
    #allocation3 [shape = 's32[1]{0}', space=sflag, size = 0x4, scoped, tag = 'scoped memory for tpu_custom_call.1']
    %14 = vsyncpa [#allocation3], 0
    // Predicated region
    $region2: #{tpu_custom_call.1} parent=1 // pred_check
      _
    $region3: #{tpu_custom_call.1} parent=1 // pred_check_branch
      %16 = sbr.rel (0) target = $region5
    $region4: #{tpu_custom_call.1} parent=1 // pred_region
      _
    $region5: #{tpu_custom_call.1} parent=1 // pred_fallthru
      _
    // Predicated region
    $region6: #{tpu_custom_call.1} parent=1 // pred_check
      _
    $region7: #{tpu_custom_call.1} parent=1 // pred_check_branch
      %18 = sbr.rel (0) target = $region9
    $region8: #{tpu_custom_call.1} parent=1 // pred_region
      _
    $region9: #{tpu_custom_call.1} parent=1 // pred_fallthru
      _
    // Predicated region
    $region10: #{tpu_custom_call.1} parent=1 // pred_check
      _
    $region11: #{tpu_custom_call.1} parent=1 // pred_check_branch
      %20 = sbr.rel (0) target = $region13
    $region12: #{tpu_custom_call.1} parent=1 // pred_region
      _
    $region13: #{tpu_custom_call.1} parent=1 // pred_fallthru
      _
    // Predicated region
    $region14: #{tpu_custom_call.1} parent=1 // pred_check
      _
    $region15: #{tpu_custom_call.1} parent=1 // pred_check_branch
      %22 = sbr.rel (0) target = $region17
    $region16: #{tpu_custom_call.1} parent=1 // pred_region
      _
    $region17: #{tpu_custom_call.1} parent=1 // pred_fallthru
      _
    // Predicated region
    $region18: #{tpu_custom_call.1} parent=1 // pred_check
      _
    $region19: #{tpu_custom_call.1} parent=1 // pred_check_branch
      %24 = sbr.rel (0) target = $region21
    $region20: #{tpu_custom_call.1} parent=1 // pred_region
      _
    $region21: #{tpu_custom_call.1} parent=1 // pred_fallthru
      _
    // Predicated region
    $region22: #{tpu_custom_call.1} parent=1 // pred_check
      _
    $region23: #{tpu_custom_call.1} parent=1 // pred_check_branch
      %26 = sbr.rel (0) target = $region25
    $region24: #{tpu_custom_call.1} parent=1 // pred_region
      _
    $region25: #{tpu_custom_call.1} parent=1 // pred_fallthru
      _
    // Predicated region
    $region26: #{tpu_custom_call.1} parent=1 // pred_check
      _
    $region27: #{tpu_custom_call.1} parent=1 // pred_check_branch
      %28 = sbr.rel (0) target = $region29
    $region28: #{tpu_custom_call.1} parent=1 // pred_region
      _
    $region29: #{tpu_custom_call.1} parent=1 // pred_fallthru
      _
    // Predicated region
    $region30: #{tpu_custom_call.1} parent=1 // pred_check
      _
    $region31: #{tpu_custom_call.1} parent=1 // pred_check_branch
      %30 = sbr.rel (0) target = $region33
    $region32: #{tpu_custom_call.1} parent=1 // pred_region
      _
    $region33: #{tpu_custom_call.1} parent=1 // pred_fallthru
      _
    // Predicated region
    $region34: #{tpu_custom_call.1} parent=1 // pred_check
      _
    $region35: #{tpu_custom_call.1} parent=1 // pred_check_branch
      %32 = sbr.rel (0) target = $region37
    $region36: #{tpu_custom_call.1} parent=1 // pred_region
      _
    $region37: #{tpu_custom_call.1} parent=1 // pred_fallthru
      _
    %v33 = vld [vmem:[%s0] sm:$0xff]
    %v34 = vld [vmem:[%s0 + $0x8] sm:$0xff]
    %v35 = vld [vmem:[%s0 + $0x10] sm:$0xff]
    %v36 = vld [vmem:[%s0 + $0x18] sm:$0xff]
    %v37 = vld [vmem:[%s0 + $0x20] sm:$0xff]
    %v38 = vld [vmem:[%s0 + $0x28] sm:$0xff]
    %v39 = vld [vmem:[%s0 + $0x30] sm:$0xff]
    %v40 = vld [vmem:[%s0 + $0x38] sm:$0xff]
    %v41 = vld [vmem:[%s0 + $0x40] sm:$0xff]
    %v42 = vld [vmem:[%s0 + $0x48] sm:$0xff]
    %v43 = vld [vmem:[%s0 + $0x50] sm:$0xff]
    %v44 = vld [vmem:[%s1] sm:$0xff]
    %v45 = vld [vmem:[%s1 + $0x8] sm:$0xff]
    %v46 = vld [vmem:[%s1 + $0x10] sm:$0xff]
    %v47 = vld [vmem:[%s1 + $0x18] sm:$0x1]
    %v48 = vld [vmem:[%s6] sm:$0xff]
    %v49 = vld [vmem:[%s6 + $0x8] sm:$0xff]
    %v50 = vld [vmem:[%s6 + $0x10] sm:$0xff]
    %v51 = vld [vmem:[%s6 + $0x18] sm:$0xff]
    %v52 = vld [vmem:[%s6 + $0x20] sm:$0xff]
    %v53 = vld [vmem:[%s6 + $0x28] sm:$0xff]
    %v54 = vld [vmem:[%s6 + $0x30] sm:$0xff]
    %v55 = vld [vmem:[%s6 + $0x38] sm:$0xff]
    %v56 = vld [vmem:[%s6 + $0x40] sm:$0xff]
    %v57 = vld [vmem:[%s6 + $0x48] sm:$0xff]
    %vm69 = vcmask 1046528
    %v70 = vrot.slane %v33, 1
    %v71 = vrot.slane %v34, 1
    %v72 = vsel %vm69, %v70, %v71
    %v73 = vrot.slane %v35, 1
    %v74 = vsel %vm69, %v71, %v73
    %v75 = vrot.slane %v36, 1
    %v76 = vsel %vm69, %v73, %v75
    %v77 = vrot.slane %v37, 1
    %v78 = vsel %vm69, %v75, %v77
    %v79 = vrot.slane %v38, 1
    %v80 = vsel %vm69, %v77, %v79
    %v81 = vrot.slane %v39, 1
    %v82 = vsel %vm69, %v79, %v81
    %v83 = vrot.slane %v40, 1
    %v84 = vsel %vm69, %v81, %v83
    %v85 = vrot.slane %v41, 1
    %v86 = vsel %vm69, %v83, %v85
    %v87 = vrot.slane %v42, 1
    %v88 = vsel %vm69, %v85, %v87
    %v89 = vrot.slane %v43, 1
    %v90 = vsel %vm69, %v87, %v89
    %91 = vrot.lane.b32.xlu0 %v72, 8
    %v92 = vpop.permute.xlu0 %91
    %93 = vrot.lane.b32.xlu0 %v74, 8
    %v94 = vpop.permute.xlu0 %93
    %95 = vrot.lane.b32.xlu0 %v76, 8
    %v96 = vpop.permute.xlu0 %95
    %97 = vrot.lane.b32.xlu0 %v78, 8
    %v98 = vpop.permute.xlu0 %97
    %99 = vrot.lane.b32.xlu0 %v80, 8
    %v100 = vpop.permute.xlu0 %99
    %101 = vrot.lane.b32.xlu0 %v82, 8
    %v102 = vpop.permute.xlu0 %101
    %103 = vrot.lane.b32.xlu0 %v84, 8
    %v104 = vpop.permute.xlu0 %103
    %105 = vrot.lane.b32.xlu0 %v86, 8
    %v106 = vpop.permute.xlu0 %105
    %107 = vrot.lane.b32.xlu0 %v88, 8
    %v108 = vpop.permute.xlu0 %107
    %109 = vrot.lane.b32.xlu0 %v90, 8
    %v110 = vpop.permute.xlu0 %109
    %vm121 = vcmask 1045504
    %v122 = vrot.slane %v33, 2
    %v123 = vrot.slane %v34, 2
    %v124 = vsel %vm121, %v122, %v123
    %v125 = vrot.slane %v35, 2
    %v126 = vsel %vm121, %v123, %v125
    %v127 = vrot.slane %v36, 2
    %v128 = vsel %vm121, %v125, %v127
    %v129 = vrot.slane %v37, 2
    %v130 = vsel %vm121, %v127, %v129
    %v131 = vrot.slane %v38, 2
    %v132 = vsel %vm121, %v129, %v131
    %v133 = vrot.slane %v39, 2
    %v134 = vsel %vm121, %v131, %v133
    %v135 = vrot.slane %v40, 2
    %v136 = vsel %vm121, %v133, %v135
    %v137 = vrot.slane %v41, 2
    %v138 = vsel %vm121, %v135, %v137
    %v139 = vrot.slane %v42, 2
    %v140 = vsel %vm121, %v137, %v139
    %v141 = vrot.slane %v43, 2
    %v142 = vsel %vm121, %v139, %v141
    %143 = vrot.lane.b32.xlu0 %v124, 16
    %v144 = vpop.permute.xlu0 %143
    %145 = vrot.lane.b32.xlu0 %v126, 16
    %v146 = vpop.permute.xlu0 %145
    %147 = vrot.lane.b32.xlu0 %v128, 16
    %v148 = vpop.permute.xlu0 %147
    %149 = vrot.lane.b32.xlu0 %v130, 16
    %v150 = vpop.permute.xlu0 %149
    %151 = vrot.lane.b32.xlu0 %v132, 16
    %v152 = vpop.permute.xlu0 %151
    %153 = vrot.lane.b32.xlu0 %v134, 16
    %v154 = vpop.permute.xlu0 %153
    %155 = vrot.lane.b32.xlu0 %v136, 16
    %v156 = vpop.permute.xlu0 %155
    %157 = vrot.lane.b32.xlu0 %v138, 16
    %v158 = vpop.permute.xlu0 %157
    %159 = vrot.lane.b32.xlu0 %v140, 16
    %v160 = vpop.permute.xlu0 %159
    %161 = vrot.lane.b32.xlu0 %v142, 16
    %v162 = vpop.permute.xlu0 %161
    %vm173 = vcmask 64512
    %v174 = vsel %vm173, %v33, %v92
    %v175 = vsel %vm173, %v34, %v94
    %v176 = vsel %vm173, %v35, %v96
    %v177 = vsel %vm173, %v36, %v98
    %v178 = vsel %vm173, %v37, %v100
    %v179 = vsel %vm173, %v38, %v102
    %v180 = vsel %vm173, %v39, %v104
    %v181 = vsel %vm173, %v40, %v106
    %v182 = vsel %vm173, %v41, %v108
    %v183 = vsel %vm173, %v42, %v110
    %vm184 = vcmask 130048
    %v185 = vsel %vm184, %v174, %v144
    %v186 = vsel %vm184, %v175, %v146
    %v187 = vsel %vm184, %v176, %v148
    %v188 = vsel %vm184, %v177, %v150
    %v189 = vsel %vm184, %v178, %v152
    %v190 = vsel %vm184, %v179, %v154
    %v191 = vsel %vm184, %v180, %v156
    %v192 = vsel %vm184, %v181, %v158
    %v193 = vsel %vm184, %v182, %v160
    %v194 = vsel %vm184, %v183, %v162
    %vm195 = vcmask 195584
    %v196 = vsel %vm195, %v185, 1.0
    %v197 = vsel %vm195, %v186, 1.0
    %v198 = vsel %vm195, %v187, 1.0
    %v199 = vsel %vm195, %v188, 1.0
    %v200 = vsel %vm195, %v189, 1.0
    %v201 = vsel %vm195, %v190, 1.0
    %v202 = vsel %vm195, %v191, 1.0
    %v203 = vsel %vm195, %v192, 1.0
    %v204 = vsel %vm195, %v193, 1.0
    %v205 = vsel %vm195, %v194, 1.0
    %vm206 = vcmask 203776
    %v208 = vsel %vm206, %v196, 0
    %v211 = vsel %vm206, %v197, 0
    %v214 = vsel %vm206, %v198, 0
    %v217 = vsel %vm206, %v199, 0
    %v220 = vsel %vm206, %v200, 0
    %v223 = vsel %vm206, %v201, 0
    %v226 = vsel %vm206, %v202, 0
    %v229 = vsel %vm206, %v203, 0
    %v232 = vsel %vm206, %v204, 0
    %v235 = vsel %vm206, %v205, 0
    %vm237 = vcmask 1040384
    %v239 = vsel %vm237, %v47, 0
    %241 = vmatprep.subr.mxu0 0.0
    %242 = vmatpush1.msra.mxu0 %v44
    %243 = vmatprep.subr.mxu0 0.0
    %244 = vmatpush1.msra.mxu0 %v45
    %245 = vmatprep.subr.mxu0 0.0
    %246 = vmatpush1.msra.mxu0 %v46
    %247 = vmatprep.subr.mxu0 0.0
    %248 = vmatpush1.msra.mxu0 %v239
    %249 = vmatprep.subr.mxu0 0.0
    %250 = vmatpush1.msra.mxu0 0.0
    %251 = vmatprep.subr.mxu0 0.0
    %252 = vmatpush1.msra.mxu0 0.0
    %253 = vmatprep.subr.mxu0 0.0
    %254 = vmatpush1.msra.mxu0 0.0
    %255 = vmatprep.subr.mxu0 0.0
    %256 = vmatpush1.msra.mxu0 0.0
    %257 = vmatprep.subr.mxu0 0.0
    %258 = vmatpush1.msra.mxu0 0.0
    %259 = vmatprep.subr.mxu0 0.0
    %260 = vmatpush1.msra.mxu0 0.0
    %261 = vmatprep.subr.mxu0 0.0
    %262 = vmatpush1.msra.mxu0 0.0
    %263 = vmatprep.subr.mxu0 0.0
    %264 = vmatpush1.msra.mxu0 0.0
    %265 = vmatprep.subr.mxu0 0.0
    %266 = vmatpush1.msra.mxu0 0.0
    %267 = vmatprep.subr.mxu0 0.0
    %268 = vmatpush1.msra.mxu0 0.0
    %269 = vmatprep.subr.mxu0 0.0
    %270 = vmatpush1.msra.mxu0 0.0
    %271 = vmatprep.subr.mxu0 0.0
    %272 = vmatpush1.msra.mxu0 0.0
    %273 = vmatprep.subr.mxu0 0.0
    %274 = vmatpush1.msra.mxu0 0.0
    %275 = vmatprep.subr.mxu0 0.0
    %276 = vmatpush1.msra.mxu0 0.0
    %277 = vmatprep.subr.mxu0 0.0
    %278 = vmatpush1.msra.mxu0 0.0
    %279 = vmatprep.subr.mxu0 0.0
    %280 = vmatpush1.msra.mxu0 0.0
    %281 = vmatprep.subr.mxu0 0.0
    %282 = vmatpush1.msra.mxu0 0.0
    %283 = vmatprep.subr.mxu0 0.0
    %284 = vmatpush1.msra.mxu0 0.0
    %285 = vmatprep.subr.mxu0 0.0
    %286 = vmatpush1.msra.mxu0 0.0
    %287 = vmatprep.subr.mxu0 0.0
    %288 = vmatpush1.msra.mxu0 0.0
    %289 = vmatprep.subr.mxu0 0.0
    %290 = vmatpush1.msra.mxu0 0.0
    %291 = vmatprep.subr.mxu0 0.0
    %292 = vmatpush1.msra.mxu0 0.0
    %293 = vmatprep.subr.mxu0 0.0
    %294 = vmatpush1.msra.mxu0 0.0
    %295 = vmatprep.subr.mxu0 0.0
    %296 = vmatpush1.msra.mxu0 0.0
    %297 = vmatprep.subr.mxu0 0.0
    %298 = vmatpush1.msra.mxu0 0.0
    %299 = vmatprep.subr.mxu0 0.0
    %300 = vmatpush1.msra.mxu0 0.0
    %301 = vmatprep.subr.mxu0 0.0
    %302 = vmatpush1.msra.mxu0 0.0
    %303 = vmatprep.subr.mxu0 0.0
    %304 = vmatpush1.msra.mxu0 0.0
    %305 = vmatprep.mubr.f32.mxu0 0.0
    %306 = vmatmul.mubr.f32.gmra.mrb[0].mxu0 %v208
    %v307 = vpop.f32.mrb[0].mxu0
    %v308 = vadd.f32 0.0, %v307
    %v309 = vpop.f32.mrb[0].mxu0
    %310 = vmatprep.mubr.f32.mxu0 0.0
    %311 = vmatmul.mubr.f32.gmra.mrb[0].mxu0 %v211
    %v312 = vpop.f32.mrb[0].mxu0
    %v313 = vadd.f32 0.0, %v312
    %v314 = vpop.f32.mrb[0].mxu0
    %315 = vmatprep.mubr.f32.mxu0 0.0
    %316 = vmatmul.mubr.f32.gmra.mrb[0].mxu0 %v214
    %v317 = vpop.f32.mrb[0].mxu0
    %v318 = vadd.f32 0.0, %v317
    %v319 = vpop.f32.mrb[0].mxu0
    %320 = vmatprep.mubr.f32.mxu0 0.0
    %321 = vmatmul.mubr.f32.gmra.mrb[0].mxu0 %v217
    %v322 = vpop.f32.mrb[0].mxu0
    %v323 = vadd.f32 0.0, %v322
    %v324 = vpop.f32.mrb[0].mxu0
    %325 = vmatprep.mubr.f32.mxu0 0.0
    %326 = vmatmul.mubr.f32.gmra.mrb[0].mxu0 %v220
    %v327 = vpop.f32.mrb[0].mxu0
    %v328 = vadd.f32 0.0, %v327
    %v329 = vpop.f32.mrb[0].mxu0
    %330 = vmatprep.mubr.f32.mxu0 0.0
    %331 = vmatmul.mubr.f32.gmra.mrb[0].mxu0 %v223
    %v332 = vpop.f32.mrb[0].mxu0
    %v333 = vadd.f32 0.0, %v332
    %v334 = vpop.f32.mrb[0].mxu0
    %335 = vmatprep.mubr.f32.mxu0 0.0
    %336 = vmatmul.mubr.f32.gmra.mrb[0].mxu0 %v226
    %v337 = vpop.f32.mrb[0].mxu0
    %v338 = vadd.f32 0.0, %v337
    %v339 = vpop.f32.mrb[0].mxu0
    %340 = vmatprep.mubr.f32.mxu0 0.0
    %341 = vmatmul.mubr.f32.gmra.mrb[0].mxu0 %v229
    %v342 = vpop.f32.mrb[0].mxu0
    %v343 = vadd.f32 0.0, %v342
    %v344 = vpop.f32.mrb[0].mxu0
    %345 = vmatprep.mubr.f32.mxu0 0.0
    %346 = vmatmul.mubr.f32.gmra.mrb[0].mxu0 %v232
    %v347 = vpop.f32.mrb[0].mxu0
    %v348 = vadd.f32 0.0, %v347
    %v349 = vpop.f32.mrb[0].mxu0
    %350 = vmatprep.mubr.f32.mxu0 0.0
    %351 = vmatmul.mubr.f32.gmra.mrb[0].mxu0 %v235
    %v352 = vpop.f32.mrb[0].mxu0
    %v353 = vadd.f32 0.0, %v352
    %v354 = vpop.f32.mrb[0].mxu0
    %355 = vdwg.mxu0
    %v356 = vmax.f32 %v308, 0.0
    %v357 = vmax.f32 %v313, 0.0
    %v358 = vmax.f32 %v318, 0.0
    %v359 = vmax.f32 %v323, 0.0
    %v360 = vmax.f32 %v328, 0.0
    %v361 = vmax.f32 %v333, 0.0
    %v362 = vmax.f32 %v338, 0.0
    %v363 = vmax.f32 %v343, 0.0
    %v364 = vmax.f32 %v348, 0.0
    %v365 = vmax.f32 %v353, 0.0
    %367 = vset.pattern.permute.xlu0 0
    %368 = vperm.xlu0 %367, %v48
    %v369 = vpop.permute.xlu0 %368
    %372 = vset.pattern.permute.xlu0 0
    %373 = vperm.xlu0 %372, %v49
    %v374 = vpop.permute.xlu0 %373
    %377 = vset.pattern.permute.xlu0 0
    %378 = vperm.xlu0 %377, %v50
    %v379 = vpop.permute.xlu0 %378
    %382 = vset.pattern.permute.xlu0 0
    %383 = vperm.xlu0 %382, %v51
    %v384 = vpop.permute.xlu0 %383
    %387 = vset.pattern.permute.xlu0 0
    %388 = vperm.xlu0 %387, %v52
    %v389 = vpop.permute.xlu0 %388
    %392 = vset.pattern.permute.xlu0 0
    %393 = vperm.xlu0 %392, %v53
    %v394 = vpop.permute.xlu0 %393
    %397 = vset.pattern.permute.xlu0 0
    %398 = vperm.xlu0 %397, %v54
    %v399 = vpop.permute.xlu0 %398
    %402 = vset.pattern.permute.xlu0 0
    %403 = vperm.xlu0 %402, %v55
    %v404 = vpop.permute.xlu0 %403
    %407 = vset.pattern.permute.xlu0 0
    %408 = vperm.xlu0 %407, %v56
    %v409 = vpop.permute.xlu0 %408
    %412 = vset.pattern.permute.xlu0 0
    %413 = vperm.xlu0 %412, %v57
    %v414 = vpop.permute.xlu0 %413
    %v416 = vmul.f32 %v356, %v369
    %v417 = vmul.f32 %v357, %v374
    %v418 = vmul.f32 %v358, %v379
    %v419 = vmul.f32 %v359, %v384
    %v420 = vmul.f32 %v360, %v389
    %v421 = vmul.f32 %v361, %v394
    %v422 = vmul.f32 %v362, %v399
    %v423 = vmul.f32 %v363, %v404
    %v424 = vmul.f32 %v364, %v409
    %v425 = vmul.f32 %v365, %v414
    %vm426 = vcmask 261120
    %v427 = vsel %vm426, %v416, 0.0
    %v428 = vsel %vm426, %v417, 0.0
    %v429 = vadd.f32 %v427, %v428
    %v430 = vsel %vm426, %v418, 0.0
    %v431 = vadd.f32 %v429, %v430
    %v432 = vsel %vm426, %v419, 0.0
    %v433 = vadd.f32 %v431, %v432
    %v434 = vsel %vm426, %v420, 0.0
    %v435 = vadd.f32 %v433, %v434
    %v436 = vsel %vm426, %v421, 0.0
    %v437 = vadd.f32 %v435, %v436
    %v438 = vsel %vm426, %v422, 0.0
    %v439 = vadd.f32 %v437, %v438
    %v440 = vsel %vm426, %v423, 0.0
    %v441 = vadd.f32 %v439, %v440
    %v442 = vsel %vm426, %v424, 0.0
    %v443 = vadd.f32 %v441, %v442
    %v444 = vsel %vm426, %v425, 0.0
    %v445 = vadd.f32 %v443, %v444
    %v446 = vrot.slane %v445, 4
    %v447 = vadd.f32 %v445, %v446
    %v448 = vrot.slane %v447, 2
    %v449 = vadd.f32 %v447, %v448
    %v450 = vrot.slane %v449, 1
    %v451 = vadd.f32 %v449, %v450
    %v452 = vmul.f32 %v416, %v356
    %v453 = vmul.f32 %v417, %v357
    %v454 = vmul.f32 %v418, %v358
    %v455 = vmul.f32 %v419, %v359
    %v456 = vmul.f32 %v420, %v360
    %v457 = vmul.f32 %v421, %v361
    %v458 = vmul.f32 %v422, %v362
    %v459 = vmul.f32 %v423, %v363
    %v460 = vmul.f32 %v424, %v364
    %v461 = vmul.f32 %v425, %v365
    %v462 = vsel %vm426, %v452, 0.0
    %v463 = vsel %vm426, %v453, 0.0
    %v464 = vadd.f32 %v462, %v463
    %v465 = vsel %vm426, %v454, 0.0
    %v466 = vadd.f32 %v464, %v465
    %v467 = vsel %vm426, %v455, 0.0
    %v468 = vadd.f32 %v466, %v467
    %v469 = vsel %vm426, %v456, 0.0
    %v470 = vadd.f32 %v468, %v469
    %v471 = vsel %vm426, %v457, 0.0
    %v472 = vadd.f32 %v470, %v471
    %v473 = vsel %vm426, %v458, 0.0
    %v474 = vadd.f32 %v472, %v473
    %v475 = vsel %vm426, %v459, 0.0
    %v476 = vadd.f32 %v474, %v475
    %v477 = vsel %vm426, %v460, 0.0
    %v478 = vadd.f32 %v476, %v477
    %v479 = vsel %vm426, %v461, 0.0
    %v480 = vadd.f32 %v478, %v479
    %v481 = vrot.slane %v480, 4
    %v482 = vadd.f32 %v480, %v481
    %v483 = vrot.slane %v482, 2
    %v484 = vadd.f32 %v482, %v483
    %v485 = vrot.slane %v484, 1
    %v486 = vadd.f32 %v484, %v485
    %v487 = vmul.f32 %v451, 0.013157895
    %v488 = vmul.f32 %v486, 0.013157895
    %v489 = vmul.f32 %v487, %v487
    %v490 = vsub.f32 %v488, %v489
    %v491 = vsub.f32 %v356, %v487
    %v492 = vsub.f32 %v357, %v487
    %v493 = vsub.f32 %v358, %v487
    %v494 = vsub.f32 %v359, %v487
    %v495 = vsub.f32 %v360, %v487
    %v496 = vsub.f32 %v361, %v487
    %v497 = vsub.f32 %v362, %v487
    %v498 = vsub.f32 %v363, %v487
    %v499 = vsub.f32 %v364, %v487
    %v500 = vsub.f32 %v365, %v487
    %v501 = vmax.f32 %v490, 0.0
    %v502 = vadd.f32 %v501, 1e-05
    %v503 = vrsqrt.pop %v502
    %v504 = vmul.f32 %v491, %v503
    %v505 = vmul.f32 %v492, %v503
    %v506 = vmul.f32 %v493, %v503
    %v507 = vmul.f32 %v494, %v503
    %v508 = vmul.f32 %v495, %v503
    %v509 = vmul.f32 %v496, %v503
    %v510 = vmul.f32 %v497, %v503
    %v511 = vmul.f32 %v498, %v503
    %v512 = vmul.f32 %v499, %v503
    %v513 = vmul.f32 %v500, %v503
    %v514 = vld [vmem:[%s2] sm:$0xff]
    %v515 = vld [vmem:[%s2 + $0x8] sm:$0xff]
    %v516 = vld [vmem:[%s2 + $0x10] sm:$0xff]
    %v517 = vld [vmem:[%s2 + $0x18] sm:$0xff]
    %v518 = vld [vmem:[%s2 + $0x20] sm:$0xff]
    %v519 = vld [vmem:[%s2 + $0x28] sm:$0xff]
    %v520 = vld [vmem:[%s2 + $0x30] sm:$0xff]
    %v521 = vld [vmem:[%s2 + $0x38] sm:$0xff]
    %v522 = vld [vmem:[%s2 + $0x40] sm:$0xff]
    %v523 = vld [vmem:[%s2 + $0x48] sm:$0xff]
    %v524 = vld [vmem:[%s2 + $0x50] sm:$0xff]
    %v525 = vld [vmem:[%s2 + $0x58] sm:$0xff]
    %v526 = vld [vmem:[%s2 + $0x60] sm:$0xff]
    %v527 = vld [vmem:[%s2 + $0x68] sm:$0xff]
    %v528 = vld [vmem:[%s2 + $0x70] sm:$0xff]
    %v529 = vld [vmem:[%s2 + $0x78] sm:$0xff]
    %v530 = vld [vmem:[%s2 + $0x80] sm:$0xff]
    %v531 = vld [vmem:[%s2 + $0x88] sm:$0xff]
    %v532 = vld [vmem:[%s2 + $0x90] sm:$0xff]
    %v533 = vld [vmem:[%s2 + $0x98] sm:$0xff]
    %v534 = vld [vmem:[%s2 + $0xa0] sm:$0x1]
    %v535 = vld [vmem:[%s7] sm:$0xff]
    %v536 = vld [vmem:[%s7 + $0x8] sm:$0xff]
    %v537 = vld [vmem:[%s7 + $0x10] sm:$0xff]
    %v538 = vld [vmem:[%s7 + $0x18] sm:$0xff]
    %v539 = vld [vmem:[%s7 + $0x20] sm:$0xff]
    %v540 = vld [vmem:[%s7 + $0x28] sm:$0xff]
    %v541 = vld [vmem:[%s7 + $0x30] sm:$0xff]
    %v542 = vld [vmem:[%s7 + $0x38] sm:$0xff]
    %v543 = vld [vmem:[%s7 + $0x40] sm:$0xff]
    %v554 = vrot.slane %v504, 2
    %v555 = vrot.slane %v505, 2
    %v556 = vsel %vm121, %v554, %v555
    %v557 = vrot.slane %v506, 2
    %v558 = vsel %vm121, %v555, %v557
    %v559 = vrot.slane %v507, 2
    %v560 = vsel %vm121, %v557, %v559
    %v561 = vrot.slane %v508, 2
    %v562 = vsel %vm121, %v559, %v561
    %v563 = vrot.slane %v509, 2
    %v564 = vsel %vm121, %v561, %v563
    %v565 = vrot.slane %v510, 2
    %v566 = vsel %vm121, %v563, %v565
    %v567 = vrot.slane %v511, 2
    %v568 = vsel %vm121, %v565, %v567
    %v569 = vrot.slane %v512, 2
    %v570 = vsel %vm121, %v567, %v569
    %v571 = vrot.slane %v513, 2
    %v572 = vsel %vm121, %v569, %v571
    %573 = vrot.lane.b32.xlu0 %v556, 32
    %v574 = vpop.permute.xlu0 %573
    %575 = vrot.lane.b32.xlu0 %v558, 32
    %v576 = vpop.permute.xlu0 %575
    %577 = vrot.lane.b32.xlu0 %v560, 32
    %v578 = vpop.permute.xlu0 %577
    %579 = vrot.lane.b32.xlu0 %v562, 32
    %v580 = vpop.permute.xlu0 %579
    %581 = vrot.lane.b32.xlu0 %v564, 32
    %v582 = vpop.permute.xlu0 %581
    %583 = vrot.lane.b32.xlu0 %v566, 32
    %v584 = vpop.permute.xlu0 %583
    %585 = vrot.lane.b32.xlu0 %v568, 32
    %v586 = vpop.permute.xlu0 %585
    %587 = vrot.lane.b32.xlu0 %v570, 32
    %v588 = vpop.permute.xlu0 %587
    %589 = vrot.lane.b32.xlu0 %v572, 32
    %v590 = vpop.permute.xlu0 %589
    %vm600 = vcmask 1043456
    %v601 = vrot.slane %v504, 4
    %v602 = vrot.slane %v505, 4
    %v603 = vsel %vm600, %v601, %v602
    %v604 = vrot.slane %v506, 4
    %v605 = vsel %vm600, %v602, %v604
    %v606 = vrot.slane %v507, 4
    %v607 = vsel %vm600, %v604, %v606
    %v608 = vrot.slane %v508, 4
    %v609 = vsel %vm600, %v606, %v608
    %v610 = vrot.slane %v509, 4
    %v611 = vsel %vm600, %v608, %v610
    %v612 = vrot.slane %v510, 4
    %v613 = vsel %vm600, %v610, %v612
    %v614 = vrot.slane %v511, 4
    %v615 = vsel %vm600, %v612, %v614
    %v616 = vrot.slane %v512, 4
    %v617 = vsel %vm600, %v614, %v616
    %v618 = vrot.slane %v513, 4
    %v619 = vsel %vm600, %v616, %v618
    %620 = vrot.lane.b32.xlu0 %v603, 64
    %v621 = vpop.permute.xlu0 %620
    %622 = vrot.lane.b32.xlu0 %v605, 64
    %v623 = vpop.permute.xlu0 %622
    %624 = vrot.lane.b32.xlu0 %v607, 64
    %v625 = vpop.permute.xlu0 %624
    %626 = vrot.lane.b32.xlu0 %v609, 64
    %v627 = vpop.permute.xlu0 %626
    %628 = vrot.lane.b32.xlu0 %v611, 64
    %v629 = vpop.permute.xlu0 %628
    %630 = vrot.lane.b32.xlu0 %v613, 64
    %v631 = vpop.permute.xlu0 %630
    %632 = vrot.lane.b32.xlu0 %v615, 64
    %v633 = vpop.permute.xlu0 %632
    %634 = vrot.lane.b32.xlu0 %v617, 64
    %v635 = vpop.permute.xlu0 %634
    %636 = vrot.lane.b32.xlu0 %v619, 64
    %v637 = vpop.permute.xlu0 %636
    %vm647 = vcmask 1041408
    %v648 = vrot.slane %v504, 6
    %v649 = vrot.slane %v505, 6
    %v650 = vsel %vm647, %v648, %v649
    %v651 = vrot.slane %v506, 6
    %v652 = vsel %vm647, %v649, %v651
    %v653 = vrot.slane %v507, 6
    %v654 = vsel %vm647, %v651, %v653
    %v655 = vrot.slane %v508, 6
    %v656 = vsel %vm647, %v653, %v655
    %v657 = vrot.slane %v509, 6
    %v658 = vsel %vm647, %v655, %v657
    %v659 = vrot.slane %v510, 6
    %v660 = vsel %vm647, %v657, %v659
    %v661 = vrot.slane %v511, 6
    %v662 = vsel %vm647, %v659, %v661
    %v663 = vrot.slane %v512, 6
    %v664 = vsel %vm647, %v661, %v663
    %v665 = vrot.slane %v513, 6
    %v666 = vsel %vm647, %v663, %v665
    %667 = vrot.lane.b32.xlu0 %v650, 96
    %v668 = vpop.permute.xlu0 %667
    %669 = vrot.lane.b32.xlu0 %v652, 96
    %v670 = vpop.permute.xlu0 %669
    %671 = vrot.lane.b32.xlu0 %v654, 96
    %v672 = vpop.permute.xlu0 %671
    %673 = vrot.lane.b32.xlu0 %v656, 96
    %v674 = vpop.permute.xlu0 %673
    %675 = vrot.lane.b32.xlu0 %v658, 96
    %v676 = vpop.permute.xlu0 %675
    %677 = vrot.lane.b32.xlu0 %v660, 96
    %v678 = vpop.permute.xlu0 %677
    %679 = vrot.lane.b32.xlu0 %v662, 96
    %v680 = vpop.permute.xlu0 %679
    %681 = vrot.lane.b32.xlu0 %v664, 96
    %v682 = vpop.permute.xlu0 %681
    %683 = vrot.lane.b32.xlu0 %v666, 96
    %v684 = vpop.permute.xlu0 %683
    %v694 = vsel %vm426, %v504, %v574
    %v695 = vsel %vm426, %v505, %v576
    %v696 = vsel %vm426, %v506, %v578
    %v697 = vsel %vm426, %v507, %v580
    %v698 = vsel %vm426, %v508, %v582
    %v699 = vsel %vm426, %v509, %v584
    %v700 = vsel %vm426, %v510, %v586
    %v701 = vsel %vm426, %v511, %v588
    %v702 = vsel %vm426, %v512, %v590
    %vm703 = vcmask 523264
    %v704 = vsel %vm703, %v694, %v621
    %v705 = vsel %vm703, %v695, %v623
    %v706 = vsel %vm703, %v696, %v625
    %v707 = vsel %vm703, %v697, %v627
    %v708 = vsel %vm703, %v698, %v629
    %v709 = vsel %vm703, %v699, %v631
    %v710 = vsel %vm703, %v700, %v633
    %v711 = vsel %vm703, %v701, %v635
    %v712 = vsel %vm703, %v702, %v637
    %vm713 = vcmask 785408
    %v714 = vsel %vm713, %v704, %v668
    %v715 = vsel %vm713, %v705, %v670
    %v716 = vsel %vm713, %v706, %v672
    %v717 = vsel %vm713, %v707, %v674
    %v718 = vsel %vm713, %v708, %v676
    %v719 = vsel %vm713, %v709, %v678
    %v720 = vsel %vm713, %v710, %v680
    %v721 = vsel %vm713, %v711, %v682
    %v722 = vsel %vm713, %v712, %v684
    %v723 = vsel %vm426, %v505, 1.0
    %v724 = vsel %vm426, %v506, 1.0
    %v725 = vsel %vm426, %v507, 1.0
    %v726 = vsel %vm426, %v508, 1.0
    %v727 = vsel %vm426, %v509, 1.0
    %v728 = vsel %vm426, %v510, 1.0
    %v729 = vsel %vm426, %v511, 1.0
    %v730 = vsel %vm426, %v512, 1.0
    %v731 = vsel %vm426, %v513, 1.0
    %vm732 = vcmask 269312
    %v734 = vsel %vm732, %v723, 0
    %v737 = vsel %vm732, %v724, 0
    %v740 = vsel %vm732, %v725, 0
    %v743 = vsel %vm732, %v726, 0
    %v746 = vsel %vm732, %v727, 0
    %v749 = vsel %vm732, %v728, 0
    %v752 = vsel %vm732, %v729, 0
    %v755 = vsel %vm732, %v730, 0
    %v758 = vsel %vm732, %v731, 0
    %v761 = vsel %vm237, %v534, 0
    %763 = vmatprep.subr.mxu0 0.0
    %764 = vmatpush1.msra.mxu0 %v514
    %765 = vmatprep.subr.mxu0 0.0
    %766 = vmatpush1.msra.mxu0 %v515
    %767 = vmatprep.subr.mxu0 0.0
    %768 = vmatpush1.msra.mxu0 %v516
    %769 = vmatprep.subr.mxu0 0.0
    %770 = vmatpush1.msra.mxu0 %v517
    %771 = vmatprep.subr.mxu0 0.0
    %772 = vmatpush1.msra.mxu0 %v518
    %773 = vmatprep.subr.mxu0 0.0
    %774 = vmatpush1.msra.mxu0 %v519
    %775 = vmatprep.subr.mxu0 0.0
    %776 = vmatpush1.msra.mxu0 %v520
    %777 = vmatprep.subr.mxu0 0.0
    %778 = vmatpush1.msra.mxu0 %v521
    %779 = vmatprep.subr.mxu0 0.0
    %780 = vmatpush1.msra.mxu0 %v522
    %781 = vmatprep.subr.mxu0 0.0
    %782 = vmatpush1.msra.mxu0 %v523
    %783 = vmatprep.subr.mxu0 0.0
    %784 = vmatpush1.msra.mxu0 %v524
    %785 = vmatprep.subr.mxu0 0.0
    %786 = vmatpush1.msra.mxu0 %v525
    %787 = vmatprep.subr.mxu0 0.0
    %788 = vmatpush1.msra.mxu0 %v526
    %789 = vmatprep.subr.mxu0 0.0
    %790 = vmatpush1.msra.mxu0 %v527
    %791 = vmatprep.subr.mxu0 0.0
    %792 = vmatpush1.msra.mxu0 %v528
    %793 = vmatprep.subr.mxu0 0.0
    %794 = vmatpush1.msra.mxu0 %v529
    %795 = vmatprep.subr.mxu0 0.0
    %796 = vmatpush1.msra.mxu0 %v530
    %797 = vmatprep.subr.mxu0 0.0
    %798 = vmatpush1.msra.mxu0 %v531
    %799 = vmatprep.subr.mxu0 0.0
    %800 = vmatpush1.msra.mxu0 %v532
    %801 = vmatprep.subr.mxu0 0.0
    %802 = vmatpush1.msra.mxu0 %v533
    %803 = vmatprep.subr.mxu0 0.0
    %804 = vmatpush1.msra.mxu0 %v761
    %805 = vmatprep.subr.mxu0 0.0
    %806 = vmatpush1.msra.mxu0 0.0
    %807 = vmatprep.subr.mxu0 0.0
    %808 = vmatpush1.msra.mxu0 0.0
    %809 = vmatprep.subr.mxu0 0.0
    %810 = vmatpush1.msra.mxu0 0.0
    %811 = vmatprep.subr.mxu0 0.0
    %812 = vmatpush1.msra.mxu0 0.0
    %813 = vmatprep.subr.mxu0 0.0
    %814 = vmatpush1.msra.mxu0 0.0
    %815 = vmatprep.subr.mxu0 0.0
    %816 = vmatpush1.msra.mxu0 0.0
    %817 = vmatprep.subr.mxu0 0.0
    %818 = vmatpush1.msra.mxu0 0.0
    %819 = vmatprep.subr.mxu0 0.0
    %820 = vmatpush1.msra.mxu0 0.0
    %821 = vmatprep.subr.mxu0 0.0
    %822 = vmatpush1.msra.mxu0 0.0
    %823 = vmatprep.subr.mxu0 0.0
    %824 = vmatpush1.msra.mxu0 0.0
    %825 = vmatprep.subr.mxu0 0.0
    %826 = vmatpush1.msra.mxu0 0.0
    %827 = vmatprep.mubr.f32.mxu0 %v734
    %828 = vmatmul.mubr.f32.gmra.mrb[0].mxu0 %v714
    %v829 = vpop.f32.mrb[0].mxu0
    %v830 = vadd.f32 0.0, %v829
    %v831 = vpop.f32.mrb[0].mxu0
    %832 = vmatprep.mubr.f32.mxu0 %v737
    %833 = vmatmul.mubr.f32.gmra.mrb[0].mxu0 %v715
    %v834 = vpop.f32.mrb[0].mxu0
    %v835 = vadd.f32 0.0, %v834
    %v836 = vpop.f32.mrb[0].mxu0
    %837 = vmatprep.mubr.f32.mxu0 %v740
    %838 = vmatmul.mubr.f32.gmra.mrb[0].mxu0 %v716
    %v839 = vpop.f32.mrb[0].mxu0
    %v840 = vadd.f32 0.0, %v839
    %v841 = vpop.f32.mrb[0].mxu0
    %842 = vmatprep.mubr.f32.mxu0 %v743
    %843 = vmatmul.mubr.f32.gmra.mrb[0].mxu0 %v717
    %v844 = vpop.f32.mrb[0].mxu0
    %v845 = vadd.f32 0.0, %v844
    %v846 = vpop.f32.mrb[0].mxu0
    %847 = vmatprep.mubr.f32.mxu0 %v746
    %848 = vmatmul.mubr.f32.gmra.mrb[0].mxu0 %v718
    %v849 = vpop.f32.mrb[0].mxu0
    %v850 = vadd.f32 0.0, %v849
    %v851 = vpop.f32.mrb[0].mxu0
    %852 = vmatprep.mubr.f32.mxu0 %v749
    %853 = vmatmul.mubr.f32.gmra.mrb[0].mxu0 %v719
    %v854 = vpop.f32.mrb[0].mxu0
    %v855 = vadd.f32 0.0, %v854
    %v856 = vpop.f32.mrb[0].mxu0
    %857 = vmatprep.mubr.f32.mxu0 %v752
    %858 = vmatmul.mubr.f32.gmra.mrb[0].mxu0 %v720
    %v859 = vpop.f32.mrb[0].mxu0
    %v860 = vadd.f32 0.0, %v859
    %v861 = vpop.f32.mrb[0].mxu0
    %862 = vmatprep.mubr.f32.mxu0 %v755
    %863 = vmatmul.mubr.f32.gmra.mrb[0].mxu0 %v721
    %v864 = vpop.f32.mrb[0].mxu0
    %v865 = vadd.f32 0.0, %v864
    %v866 = vpop.f32.mrb[0].mxu0
    %867 = vmatprep.mubr.f32.mxu0 %v758
    %868 = vmatmul.mubr.f32.gmra.mrb[0].mxu0 %v722
    %v869 = vpop.f32.mrb[0].mxu0
    %v870 = vadd.f32 0.0, %v869
    %v871 = vpop.f32.mrb[0].mxu0
    %872 = vdwg.mxu0
    %v873 = vmax.f32 %v830, 0.0
    %v874 = vmax.f32 %v835, 0.0
    %v875 = vmax.f32 %v840, 0.0
    %v876 = vmax.f32 %v845, 0.0
    %v877 = vmax.f32 %v850, 0.0
    %v878 = vmax.f32 %v855, 0.0
    %v879 = vmax.f32 %v860, 0.0
    %v880 = vmax.f32 %v865, 0.0
    %v881 = vmax.f32 %v870, 0.0
    %883 = vset.pattern.permute.xlu0 0
    %884 = vperm.xlu0 %883, %v535
    %v885 = vpop.permute.xlu0 %884
    %888 = vset.pattern.permute.xlu0 0
    %889 = vperm.xlu0 %888, %v536
    %v890 = vpop.permute.xlu0 %889
    %893 = vset.pattern.permute.xlu0 0
    %894 = vperm.xlu0 %893, %v537
    %v895 = vpop.permute.xlu0 %894
    %898 = vset.pattern.permute.xlu0 0
    %899 = vperm.xlu0 %898, %v538
    %v900 = vpop.permute.xlu0 %899
    %903 = vset.pattern.permute.xlu0 0
    %904 = vperm.xlu0 %903, %v539
    %v905 = vpop.permute.xlu0 %904
    %908 = vset.pattern.permute.xlu0 0
    %909 = vperm.xlu0 %908, %v540
    %v910 = vpop.permute.xlu0 %909
    %913 = vset.pattern.permute.xlu0 0
    %914 = vperm.xlu0 %913, %v541
    %v915 = vpop.permute.xlu0 %914
    %918 = vset.pattern.permute.xlu0 0
    %919 = vperm.xlu0 %918, %v542
    %v920 = vpop.permute.xlu0 %919
    %923 = vset.pattern.permute.xlu0 0
    %924 = vperm.xlu0 %923, %v543
    %v925 = vpop.permute.xlu0 %924
    %v927 = vmul.f32 %v873, %v885
    %v928 = vmul.f32 %v874, %v890
    %v929 = vmul.f32 %v875, %v895
    %v930 = vmul.f32 %v876, %v900
    %v931 = vmul.f32 %v877, %v905
    %v932 = vmul.f32 %v878, %v910
    %v933 = vmul.f32 %v879, %v915
    %v934 = vmul.f32 %v880, %v920
    %v935 = vmul.f32 %v881, %v925
    %v936 = vsel %vm426, %v927, 0.0
    %v937 = vsel %vm426, %v928, 0.0
    %v938 = vadd.f32 %v936, %v937
    %v939 = vsel %vm426, %v929, 0.0
    %v940 = vadd.f32 %v938, %v939
    %v941 = vsel %vm426, %v930, 0.0
    %v942 = vadd.f32 %v940, %v941
    %v943 = vsel %vm426, %v931, 0.0
    %v944 = vadd.f32 %v942, %v943
    %v945 = vsel %vm426, %v932, 0.0
    %v946 = vadd.f32 %v944, %v945
    %v947 = vsel %vm426, %v933, 0.0
    %v948 = vadd.f32 %v946, %v947
    %v949 = vsel %vm426, %v934, 0.0
    %v950 = vadd.f32 %v948, %v949
    %v951 = vsel %vm426, %v935, 0.0
    %v952 = vadd.f32 %v950, %v951
    %v953 = vrot.slane %v952, 4
    %v954 = vadd.f32 %v952, %v953
    %v955 = vrot.slane %v954, 2
    %v956 = vadd.f32 %v954, %v955
    %v957 = vrot.slane %v956, 1
    %v958 = vadd.f32 %v956, %v957
    %v959 = vmul.f32 %v927, %v873
    %v960 = vmul.f32 %v928, %v874
    %v961 = vmul.f32 %v929, %v875
    %v962 = vmul.f32 %v930, %v876
    %v963 = vmul.f32 %v931, %v877
    %v964 = vmul.f32 %v932, %v878
    %v965 = vmul.f32 %v933, %v879
    %v966 = vmul.f32 %v934, %v880
    %v967 = vmul.f32 %v935, %v881
    %v968 = vsel %vm426, %v959, 0.0
    %v969 = vsel %vm426, %v960, 0.0
    %v970 = vadd.f32 %v968, %v969
    %v971 = vsel %vm426, %v961, 0.0
    %v972 = vadd.f32 %v970, %v971
    %v973 = vsel %vm426, %v962, 0.0
    %v974 = vadd.f32 %v972, %v973
    %v975 = vsel %vm426, %v963, 0.0
    %v976 = vadd.f32 %v974, %v975
    %v977 = vsel %vm426, %v964, 0.0
    %v978 = vadd.f32 %v976, %v977
    %v979 = vsel %vm426, %v965, 0.0
    %v980 = vadd.f32 %v978, %v979
    %v981 = vsel %vm426, %v966, 0.0
    %v982 = vadd.f32 %v980, %v981
    %v983 = vsel %vm426, %v967, 0.0
    %v984 = vadd.f32 %v982, %v983
    %v985 = vrot.slane %v984, 4
    %v986 = vadd.f32 %v984, %v985
    %v987 = vrot.slane %v986, 2
    %v988 = vadd.f32 %v986, %v987
    %v989 = vrot.slane %v988, 1
    %v990 = vadd.f32 %v988, %v989
    %v991 = vmul.f32 %v958, 0.016666668
    %v992 = vmul.f32 %v990, 0.016666668
    %v993 = vmul.f32 %v991, %v991
    %v994 = vsub.f32 %v992, %v993
    %v995 = vsub.f32 %v873, %v991
    %v996 = vsub.f32 %v874, %v991
    %v997 = vsub.f32 %v875, %v991
    %v998 = vsub.f32 %v876, %v991
    %v999 = vsub.f32 %v877, %v991
    %v1000 = vsub.f32 %v878, %v991
    %v1001 = vsub.f32 %v879, %v991
    %v1002 = vsub.f32 %v880, %v991
    %v1003 = vsub.f32 %v881, %v991
    %v1004 = vmax.f32 %v994, 0.0
    %v1005 = vadd.f32 %v1004, 1e-05
    %v1006 = vrsqrt.pop %v1005
    %v1007 = vmul.f32 %v995, %v1006
    %v1008 = vmul.f32 %v996, %v1006
    %v1009 = vmul.f32 %v997, %v1006
    %v1010 = vmul.f32 %v998, %v1006
    %v1011 = vmul.f32 %v999, %v1006
    %v1012 = vmul.f32 %v1000, %v1006
    %v1013 = vmul.f32 %v1001, %v1006
    %v1014 = vmul.f32 %v1002, %v1006
    %v1015 = vmul.f32 %v1003, %v1006
    %v1016 = vld [vmem:[%s3] sm:$0xff]
    %v1017 = vld [vmem:[%s3 + $0x8] sm:$0xff]
    %v1018 = vld [vmem:[%s3 + $0x10] sm:$0xff]
    %v1019 = vld [vmem:[%s3 + $0x18] sm:$0xff]
    %v1020 = vld [vmem:[%s3 + $0x20] sm:$0xff]
    %v1021 = vld [vmem:[%s3 + $0x28] sm:$0xff]
    %v1022 = vld [vmem:[%s3 + $0x30] sm:$0xff]
    %v1023 = vld [vmem:[%s3 + $0x38] sm:$0xff]
    %v1024 = vld [vmem:[%s3 + $0x40] sm:$0xff]
    %v1025 = vld [vmem:[%s3 + $0x48] sm:$0xff]
    %v1026 = vld [vmem:[%s3 + $0x50] sm:$0xff]
    %v1027 = vld [vmem:[%s3 + $0x58] sm:$0xff]
    %v1028 = vld [vmem:[%s3 + $0x60] sm:$0xff]
    %v1029 = vld [vmem:[%s3 + $0x68] sm:$0xff]
    %v1030 = vld [vmem:[%s3 + $0x70] sm:$0xff]
    %v1031 = vld [vmem:[%s3 + $0x78] sm:$0xff]
    %v1032 = vld [vmem:[%s3 + $0x80] sm:$0xff]
    %v1033 = vld [vmem:[%s3 + $0x88] sm:$0xff]
    %v1034 = vld [vmem:[%s3 + $0x90] sm:$0xff]
    %v1035 = vld [vmem:[%s3 + $0x98] sm:$0xff]
    %v1036 = vld [vmem:[%s3 + $0xa0] sm:$0x1]
    %v1037 = vld [vmem:[%s8] sm:$0xff]
    %v1038 = vld [vmem:[%s8 + $0x8] sm:$0xff]
    %v1039 = vld [vmem:[%s8 + $0x10] sm:$0xff]
    %v1040 = vld [vmem:[%s8 + $0x18] sm:$0xff]
    %v1041 = vld [vmem:[%s8 + $0x20] sm:$0xff]
    %v1042 = vld [vmem:[%s8 + $0x28] sm:$0xff]
    %v1043 = vld [vmem:[%s8 + $0x30] sm:$0xff]
    %v1052 = vrot.slane %v1007, 4
    %v1053 = vrot.slane %v1008, 4
    %v1054 = vsel %vm600, %v1052, %v1053
    %v1055 = vrot.slane %v1009, 4
    %v1056 = vsel %vm600, %v1053, %v1055
    %v1057 = vrot.slane %v1010, 4
    %v1058 = vsel %vm600, %v1055, %v1057
    %v1059 = vrot.slane %v1011, 4
    %v1060 = vsel %vm600, %v1057, %v1059
    %v1061 = vrot.slane %v1012, 4
    %v1062 = vsel %vm600, %v1059, %v1061
    %v1063 = vrot.slane %v1013, 4
    %v1064 = vsel %vm600, %v1061, %v1063
    %v1065 = vrot.slane %v1014, 4
    %v1066 = vsel %vm600, %v1063, %v1065
    %1067 = vrot.lane.b32.xlu0 %v1054, 32
    %v1068 = vpop.permute.xlu0 %1067
    %1069 = vrot.lane.b32.xlu0 %v1056, 32
    %v1070 = vpop.permute.xlu0 %1069
    %1071 = vrot.lane.b32.xlu0 %v1058, 32
    %v1072 = vpop.permute.xlu0 %1071
    %1073 = vrot.lane.b32.xlu0 %v1060, 32
    %v1074 = vpop.permute.xlu0 %1073
    %1075 = vrot.lane.b32.xlu0 %v1062, 32
    %v1076 = vpop.permute.xlu0 %1075
    %1077 = vrot.lane.b32.xlu0 %v1064, 32
    %v1078 = vpop.permute.xlu0 %1077
    %1079 = vrot.lane.b32.xlu0 %v1066, 32
    %v1080 = vpop.permute.xlu0 %1079
    %1088 = vrot.lane.b32.xlu0 %v1008, 64
    %v1089 = vpop.permute.xlu0 %1088
    %1090 = vrot.lane.b32.xlu0 %v1009, 64
    %v1091 = vpop.permute.xlu0 %1090
    %1092 = vrot.lane.b32.xlu0 %v1010, 64
    %v1093 = vpop.permute.xlu0 %1092
    %1094 = vrot.lane.b32.xlu0 %v1011, 64
    %v1095 = vpop.permute.xlu0 %1094
    %1096 = vrot.lane.b32.xlu0 %v1012, 64
    %v1097 = vpop.permute.xlu0 %1096
    %1098 = vrot.lane.b32.xlu0 %v1013, 64
    %v1099 = vpop.permute.xlu0 %1098
    %1100 = vrot.lane.b32.xlu0 %v1014, 64
    %v1101 = vpop.permute.xlu0 %1100
    %v1110 = vrot.slane %v1015, 4
    %v1111 = vsel %vm600, %v1065, %v1110
    %1112 = vrot.lane.b32.xlu0 %v1056, 96
    %v1113 = vpop.permute.xlu0 %1112
    %1114 = vrot.lane.b32.xlu0 %v1058, 96
    %v1115 = vpop.permute.xlu0 %1114
    %1116 = vrot.lane.b32.xlu0 %v1060, 96
    %v1117 = vpop.permute.xlu0 %1116
    %1118 = vrot.lane.b32.xlu0 %v1062, 96
    %v1119 = vpop.permute.xlu0 %1118
    %1120 = vrot.lane.b32.xlu0 %v1064, 96
    %v1121 = vpop.permute.xlu0 %1120
    %1122 = vrot.lane.b32.xlu0 %v1066, 96
    %v1123 = vpop.permute.xlu0 %1122
    %1124 = vrot.lane.b32.xlu0 %v1111, 96
    %v1125 = vpop.permute.xlu0 %1124
    %v1133 = vsel %vm426, %v1007, %v1068
    %v1134 = vsel %vm426, %v1008, %v1070
    %v1135 = vsel %vm426, %v1009, %v1072
    %v1136 = vsel %vm426, %v1010, %v1074
    %v1137 = vsel %vm426, %v1011, %v1076
    %v1138 = vsel %vm426, %v1012, %v1078
    %v1139 = vsel %vm426, %v1013, %v1080
    %v1140 = vsel %vm703, %v1133, %v1089
    %v1141 = vsel %vm703, %v1134, %v1091
    %v1142 = vsel %vm703, %v1135, %v1093
    %v1143 = vsel %vm703, %v1136, %v1095
    %v1144 = vsel %vm703, %v1137, %v1097
    %v1145 = vsel %vm703, %v1138, %v1099
    %v1146 = vsel %vm703, %v1139, %v1101
    %v1147 = vsel %vm713, %v1140, %v1113
    %v1148 = vsel %vm713, %v1141, %v1115
    %v1149 = vsel %vm713, %v1142, %v1117
    %v1150 = vsel %vm713, %v1143, %v1119
    %v1151 = vsel %vm713, %v1144, %v1121
    %v1152 = vsel %vm713, %v1145, %v1123
    %v1153 = vsel %vm713, %v1146, %v1125
    %v1154 = vsel %vm426, %v1009, 1.0
    %v1155 = vsel %vm426, %v1010, 1.0
    %v1156 = vsel %vm426, %v1011, 1.0
    %v1157 = vsel %vm426, %v1012, 1.0
    %v1158 = vsel %vm426, %v1013, 1.0
    %v1159 = vsel %vm426, %v1014, 1.0
    %v1160 = vsel %vm426, %v1015, 1.0
    %v1162 = vsel %vm732, %v1154, 0
    %v1165 = vsel %vm732, %v1155, 0
    %v1168 = vsel %vm732, %v1156, 0
    %v1171 = vsel %vm732, %v1157, 0
    %v1174 = vsel %vm732, %v1158, 0
    %v1177 = vsel %vm732, %v1159, 0
    %v1180 = vsel %vm732, %v1160, 0
    %v1183 = vsel %vm237, %v1036, 0
    %1185 = vmatprep.subr.mxu0 0.0
    %1186 = vmatpush1.msra.mxu0 %v1016
    %1187 = vmatprep.subr.mxu0 0.0
    %1188 = vmatpush1.msra.mxu0 %v1017
    %1189 = vmatprep.subr.mxu0 0.0
    %1190 = vmatpush1.msra.mxu0 %v1018
    %1191 = vmatprep.subr.mxu0 0.0
    %1192 = vmatpush1.msra.mxu0 %v1019
    %1193 = vmatprep.subr.mxu0 0.0
    %1194 = vmatpush1.msra.mxu0 %v1020
    %1195 = vmatprep.subr.mxu0 0.0
    %1196 = vmatpush1.msra.mxu0 %v1021
    %1197 = vmatprep.subr.mxu0 0.0
    %1198 = vmatpush1.msra.mxu0 %v1022
    %1199 = vmatprep.subr.mxu0 0.0
    %1200 = vmatpush1.msra.mxu0 %v1023
    %1201 = vmatprep.subr.mxu0 0.0
    %1202 = vmatpush1.msra.mxu0 %v1024
    %1203 = vmatprep.subr.mxu0 0.0
    %1204 = vmatpush1.msra.mxu0 %v1025
    %1205 = vmatprep.subr.mxu0 0.0
    %1206 = vmatpush1.msra.mxu0 %v1026
    %1207 = vmatprep.subr.mxu0 0.0
    %1208 = vmatpush1.msra.mxu0 %v1027
    %1209 = vmatprep.subr.mxu0 0.0
    %1210 = vmatpush1.msra.mxu0 %v1028
    %1211 = vmatprep.subr.mxu0 0.0
    %1212 = vmatpush1.msra.mxu0 %v1029
    %1213 = vmatprep.subr.mxu0 0.0
    %1214 = vmatpush1.msra.mxu0 %v1030
    %1215 = vmatprep.subr.mxu0 0.0
    %1216 = vmatpush1.msra.mxu0 %v1031
    %1217 = vmatprep.subr.mxu0 0.0
    %1218 = vmatpush1.msra.mxu0 %v1032
    %1219 = vmatprep.subr.mxu0 0.0
    %1220 = vmatpush1.msra.mxu0 %v1033
    %1221 = vmatprep.subr.mxu0 0.0
    %1222 = vmatpush1.msra.mxu0 %v1034
    %1223 = vmatprep.subr.mxu0 0.0
    %1224 = vmatpush1.msra.mxu0 %v1035
    %1225 = vmatprep.subr.mxu0 0.0
    %1226 = vmatpush1.msra.mxu0 %v1183
    %1227 = vmatprep.subr.mxu0 0.0
    %1228 = vmatpush1.msra.mxu0 0.0
    %1229 = vmatprep.subr.mxu0 0.0
    %1230 = vmatpush1.msra.mxu0 0.0
    %1231 = vmatprep.subr.mxu0 0.0
    %1232 = vmatpush1.msra.mxu0 0.0
    %1233 = vmatprep.subr.mxu0 0.0
    %1234 = vmatpush1.msra.mxu0 0.0
    %1235 = vmatprep.subr.mxu0 0.0
    %1236 = vmatpush1.msra.mxu0 0.0
    %1237 = vmatprep.subr.mxu0 0.0
    %1238 = vmatpush1.msra.mxu0 0.0
    %1239 = vmatprep.subr.mxu0 0.0
    %1240 = vmatpush1.msra.mxu0 0.0
    %1241 = vmatprep.subr.mxu0 0.0
    %1242 = vmatpush1.msra.mxu0 0.0
    %1243 = vmatprep.subr.mxu0 0.0
    %1244 = vmatpush1.msra.mxu0 0.0
    %1245 = vmatprep.subr.mxu0 0.0
    %1246 = vmatpush1.msra.mxu0 0.0
    %1247 = vmatprep.subr.mxu0 0.0
    %1248 = vmatpush1.msra.mxu0 0.0
    %1249 = vmatprep.mubr.f32.mxu0 %v1162
    %1250 = vmatmul.mubr.f32.gmra.mrb[0].mxu0 %v1147
    %v1251 = vpop.f32.mrb[0].mxu0
    %v1252 = vadd.f32 0.0, %v1251
    %v1253 = vpop.f32.mrb[0].mxu0
    %1254 = vmatprep.mubr.f32.mxu0 %v1165
    %1255 = vmatmul.mubr.f32.gmra.mrb[0].mxu0 %v1148
    %v1256 = vpop.f32.mrb[0].mxu0
    %v1257 = vadd.f32 0.0, %v1256
    %v1258 = vpop.f32.mrb[0].mxu0
    %1259 = vmatprep.mubr.f32.mxu0 %v1168
    %1260 = vmatmul.mubr.f32.gmra.mrb[0].mxu0 %v1149
    %v1261 = vpop.f32.mrb[0].mxu0
    %v1262 = vadd.f32 0.0, %v1261
    %v1263 = vpop.f32.mrb[0].mxu0
    %1264 = vmatprep.mubr.f32.mxu0 %v1171
    %1265 = vmatmul.mubr.f32.gmra.mrb[0].mxu0 %v1150
    %v1266 = vpop.f32.mrb[0].mxu0
    %v1267 = vadd.f32 0.0, %v1266
    %v1268 = vpop.f32.mrb[0].mxu0
    %1269 = vmatprep.mubr.f32.mxu0 %v1174
    %1270 = vmatmul.mubr.f32.gmra.mrb[0].mxu0 %v1151
    %v1271 = vpop.f32.mrb[0].mxu0
    %v1272 = vadd.f32 0.0, %v1271
    %v1273 = vpop.f32.mrb[0].mxu0
    %1274 = vmatprep.mubr.f32.mxu0 %v1177
    %1275 = vmatmul.mubr.f32.gmra.mrb[0].mxu0 %v1152
    %v1276 = vpop.f32.mrb[0].mxu0
    %v1277 = vadd.f32 0.0, %v1276
    %v1278 = vpop.f32.mrb[0].mxu0
    %1279 = vmatprep.mubr.f32.mxu0 %v1180
    %1280 = vmatmul.mubr.f32.gmra.mrb[0].mxu0 %v1153
    %v1281 = vpop.f32.mrb[0].mxu0
    %v1282 = vadd.f32 0.0, %v1281
    %v1283 = vpop.f32.mrb[0].mxu0
    %1284 = vdwg.mxu0
    %v1285 = vmax.f32 %v1252, 0.0
    %v1286 = vmax.f32 %v1257, 0.0
    %v1287 = vmax.f32 %v1262, 0.0
    %v1288 = vmax.f32 %v1267, 0.0
    %v1289 = vmax.f32 %v1272, 0.0
    %v1290 = vmax.f32 %v1277, 0.0
    %v1291 = vmax.f32 %v1282, 0.0
    %1293 = vset.pattern.permute.xlu0 0
    %1294 = vperm.xlu0 %1293, %v1037
    %v1295 = vpop.permute.xlu0 %1294
    %1298 = vset.pattern.permute.xlu0 0
    %1299 = vperm.xlu0 %1298, %v1038
    %v1300 = vpop.permute.xlu0 %1299
    %1303 = vset.pattern.permute.xlu0 0
    %1304 = vperm.xlu0 %1303, %v1039
    %v1305 = vpop.permute.xlu0 %1304
    %1308 = vset.pattern.permute.xlu0 0
    %1309 = vperm.xlu0 %1308, %v1040
    %v1310 = vpop.permute.xlu0 %1309
    %1313 = vset.pattern.permute.xlu0 0
    %1314 = vperm.xlu0 %1313, %v1041
    %v1315 = vpop.permute.xlu0 %1314
    %1318 = vset.pattern.permute.xlu0 0
    %1319 = vperm.xlu0 %1318, %v1042
    %v1320 = vpop.permute.xlu0 %1319
    %1323 = vset.pattern.permute.xlu0 0
    %1324 = vperm.xlu0 %1323, %v1043
    %v1325 = vpop.permute.xlu0 %1324
    %v1327 = vmul.f32 %v1285, %v1295
    %v1328 = vmul.f32 %v1286, %v1300
    %v1329 = vmul.f32 %v1287, %v1305
    %v1330 = vmul.f32 %v1288, %v1310
    %v1331 = vmul.f32 %v1289, %v1315
    %v1332 = vmul.f32 %v1290, %v1320
    %v1333 = vmul.f32 %v1291, %v1325
    %v1334 = vsel %vm426, %v1327, 0.0
    %v1335 = vsel %vm426, %v1328, 0.0
    %v1336 = vadd.f32 %v1334, %v1335
    %v1337 = vsel %vm426, %v1329, 0.0
    %v1338 = vadd.f32 %v1336, %v1337
    %v1339 = vsel %vm426, %v1330, 0.0
    %v1340 = vadd.f32 %v1338, %v1339
    %v1341 = vsel %vm426, %v1331, 0.0
    %v1342 = vadd.f32 %v1340, %v1341
    %v1343 = vsel %vm426, %v1332, 0.0
    %v1344 = vadd.f32 %v1342, %v1343
    %v1345 = vsel %vm426, %v1333, 0.0
    %v1346 = vadd.f32 %v1344, %v1345
    %v1347 = vrot.slane %v1346, 4
    %v1348 = vadd.f32 %v1346, %v1347
    %v1349 = vrot.slane %v1348, 2
    %v1350 = vadd.f32 %v1348, %v1349
    %v1351 = vrot.slane %v1350, 1
    %v1352 = vadd.f32 %v1350, %v1351
    %v1353 = vmul.f32 %v1327, %v1285
    %v1354 = vmul.f32 %v1328, %v1286
    %v1355 = vmul.f32 %v1329, %v1287
    %v1356 = vmul.f32 %v1330, %v1288
    %v1357 = vmul.f32 %v1331, %v1289
    %v1358 = vmul.f32 %v1332, %v1290
    %v1359 = vmul.f32 %v1333, %v1291
    %v1360 = vsel %vm426, %v1353, 0.0
    %v1361 = vsel %vm426, %v1354, 0.0
    %v1362 = vadd.f32 %v1360, %v1361
    %v1363 = vsel %vm426, %v1355, 0.0
    %v1364 = vadd.f32 %v1362, %v1363
    %v1365 = vsel %vm426, %v1356, 0.0
    %v1366 = vadd.f32 %v1364, %v1365
    %v1367 = vsel %vm426, %v1357, 0.0
    %v1368 = vadd.f32 %v1366, %v1367
    %v1369 = vsel %vm426, %v1358, 0.0
    %v1370 = vadd.f32 %v1368, %v1369
    %v1371 = vsel %vm426, %v1359, 0.0
    %v1372 = vadd.f32 %v1370, %v1371
    %v1373 = vrot.slane %v1372, 4
    %v1374 = vadd.f32 %v1372, %v1373
    %v1375 = vrot.slane %v1374, 2
    %v1376 = vadd.f32 %v1374, %v1375
    %v1377 = vrot.slane %v1376, 1
    %v1378 = vadd.f32 %v1376, %v1377
    %v1379 = vmul.f32 %v1352, 0.035714287
    %v1380 = vmul.f32 %v1378, 0.035714287
    %v1381 = vmul.f32 %v1379, %v1379
    %v1382 = vsub.f32 %v1380, %v1381
    %v1383 = vsub.f32 %v1285, %v1379
    %v1384 = vsub.f32 %v1286, %v1379
    %v1385 = vsub.f32 %v1287, %v1379
    %v1386 = vsub.f32 %v1288, %v1379
    %v1387 = vsub.f32 %v1289, %v1379
    %v1388 = vsub.f32 %v1290, %v1379
    %v1389 = vsub.f32 %v1291, %v1379
    %v1390 = vmax.f32 %v1382, 0.0
    %v1391 = vadd.f32 %v1390, 1e-05
    %v1392 = vrsqrt.pop %v1391
    %v1393 = vmul.f32 %v1383, %v1392
    %v1394 = vmul.f32 %v1384, %v1392
    %v1395 = vmul.f32 %v1385, %v1392
    %v1396 = vmul.f32 %v1386, %v1392
    %v1397 = vmul.f32 %v1387, %v1392
    %v1398 = vmul.f32 %v1388, %v1392
    %v1399 = vmul.f32 %v1389, %v1392
    %v1400 = vld [vmem:[%s4] sm:$0xff]
    %v1401 = vld [vmem:[%s4 + $0x8] sm:$0xff]
    %v1402 = vld [vmem:[%s4 + $0x10] sm:$0xff]
    %v1403 = vld [vmem:[%s4 + $0x18] sm:$0xff]
    %v1404 = vld [vmem:[%s5] sm:$0x1]
    %v1406 = vlaneseq
    %v1407 = vshrl.u32 %v1406, 7
    %v1408 = vsub.s32 0, %v1407
    %v1409 = vrot.slane %v1404, %v1408
    %v1412 = vsel %vm426, %v1393, 0
    %v1415 = vsel %vm426, %v1394, 0
    %v1418 = vsel %vm426, %v1395, 0
    %v1421 = vsel %vm426, %v1396, 0
    %v1424 = vsel %vm426, %v1397, 0
    %v1427 = vsel %vm426, %v1398, 0
    %v1430 = vsel %vm426, %v1399, 0
    %1432 = vmatprep.subr.mxu0 0.0
    %1433 = vmatpush1.msra.mxu0 %v1400
    %1434 = vmatprep.subr.mxu0 0.0
    %1435 = vmatpush1.msra.mxu0 %v1401
    %1436 = vmatprep.subr.mxu0 0.0
    %1437 = vmatpush1.msra.mxu0 %v1402
    %1438 = vmatprep.subr.mxu0 0.0
    %1439 = vmatpush1.msra.mxu0 %v1403
    %1440 = vmatprep.subr.mxu0 0.0
    %1441 = vmatpush1.msra.mxu0 0.0
    %1442 = vmatprep.subr.mxu0 0.0
    %1443 = vmatpush1.msra.mxu0 0.0
    %1444 = vmatprep.subr.mxu0 0.0
    %1445 = vmatpush1.msra.mxu0 0.0
    %1446 = vmatprep.subr.mxu0 0.0
    %1447 = vmatpush1.msra.mxu0 0.0
    %1448 = vmatprep.subr.mxu0 0.0
    %1449 = vmatpush1.msra.mxu0 0.0
    %1450 = vmatprep.subr.mxu0 0.0
    %1451 = vmatpush1.msra.mxu0 0.0
    %1452 = vmatprep.subr.mxu0 0.0
    %1453 = vmatpush1.msra.mxu0 0.0
    %1454 = vmatprep.subr.mxu0 0.0
    %1455 = vmatpush1.msra.mxu0 0.0
    %1456 = vmatprep.subr.mxu0 0.0
    %1457 = vmatpush1.msra.mxu0 0.0
    %1458 = vmatprep.subr.mxu0 0.0
    %1459 = vmatpush1.msra.mxu0 0.0
    %1460 = vmatprep.subr.mxu0 0.0
    %1461 = vmatpush1.msra.mxu0 0.0
    %1462 = vmatprep.subr.mxu0 0.0
    %1463 = vmatpush1.msra.mxu0 0.0
    %1464 = vmatprep.subr.mxu0 0.0
    %1465 = vmatpush1.msra.mxu0 0.0
    %1466 = vmatprep.subr.mxu0 0.0
    %1467 = vmatpush1.msra.mxu0 0.0
    %1468 = vmatprep.subr.mxu0 0.0
    %1469 = vmatpush1.msra.mxu0 0.0
    %1470 = vmatprep.subr.mxu0 0.0
    %1471 = vmatpush1.msra.mxu0 0.0
    %1472 = vmatprep.subr.mxu0 0.0
    %1473 = vmatpush1.msra.mxu0 0.0
    %1474 = vmatprep.subr.mxu0 0.0
    %1475 = vmatpush1.msra.mxu0 0.0
    %1476 = vmatprep.subr.mxu0 0.0
    %1477 = vmatpush1.msra.mxu0 0.0
    %1478 = vmatprep.subr.mxu0 0.0
    %1479 = vmatpush1.msra.mxu0 0.0
    %1480 = vmatprep.subr.mxu0 0.0
    %1481 = vmatpush1.msra.mxu0 0.0
    %1482 = vmatprep.subr.mxu0 0.0
    %1483 = vmatpush1.msra.mxu0 0.0
    %1484 = vmatprep.subr.mxu0 0.0
    %1485 = vmatpush1.msra.mxu0 0.0
    %1486 = vmatprep.subr.mxu0 0.0
    %1487 = vmatpush1.msra.mxu0 0.0
    %1488 = vmatprep.subr.mxu0 0.0
    %1489 = vmatpush1.msra.mxu0 0.0
    %1490 = vmatprep.subr.mxu0 0.0
    %1491 = vmatpush1.msra.mxu0 0.0
    %1492 = vmatprep.subr.mxu0 0.0
    %1493 = vmatpush1.msra.mxu0 0.0
    %1494 = vmatprep.subr.mxu0 0.0
    %1495 = vmatpush1.msra.mxu0 0.0
    %1496 = vmatprep.mubr.f32.mxu0 0.0
    %1497 = vmatmul.mubr.f32.gmra.mrb[0].mxu0 %v1412
    %v1498 = vpop.f32.mrb[0].mxu0
    %v1499 = vadd.f32 %v1409, %v1498
    %v1500 = vpop.f32.mrb[0].mxu0
    %1501 = vmatprep.mubr.f32.mxu0 0.0
    %1502 = vmatmul.mubr.f32.gmra.mrb[0].mxu0 %v1415
    %v1503 = vpop.f32.mrb[0].mxu0
    %v1504 = vadd.f32 %v1409, %v1503
    %v1505 = vpop.f32.mrb[0].mxu0
    %1506 = vmatprep.mubr.f32.mxu0 0.0
    %1507 = vmatmul.mubr.f32.gmra.mrb[0].mxu0 %v1418
    %v1508 = vpop.f32.mrb[0].mxu0
    %v1509 = vadd.f32 %v1409, %v1508
    %v1510 = vpop.f32.mrb[0].mxu0
    %1511 = vmatprep.mubr.f32.mxu0 0.0
    %1512 = vmatmul.mubr.f32.gmra.mrb[0].mxu0 %v1421
    %v1513 = vpop.f32.mrb[0].mxu0
    %v1514 = vadd.f32 %v1409, %v1513
    %v1515 = vpop.f32.mrb[0].mxu0
    %1516 = vmatprep.mubr.f32.mxu0 0.0
    %1517 = vmatmul.mubr.f32.gmra.mrb[0].mxu0 %v1424
    %v1518 = vpop.f32.mrb[0].mxu0
    %v1519 = vadd.f32 %v1409, %v1518
    %v1520 = vpop.f32.mrb[0].mxu0
    %1521 = vmatprep.mubr.f32.mxu0 0.0
    %1522 = vmatmul.mubr.f32.gmra.mrb[0].mxu0 %v1427
    %v1523 = vpop.f32.mrb[0].mxu0
    %v1524 = vadd.f32 %v1409, %v1523
    %v1525 = vpop.f32.mrb[0].mxu0
    %1526 = vmatprep.mubr.f32.mxu0 0.0
    %1527 = vmatmul.mubr.f32.gmra.mrb[0].mxu0 %v1430
    %v1528 = vpop.f32.mrb[0].mxu0
    %v1529 = vadd.f32 %v1409, %v1528
    %v1530 = vpop.f32.mrb[0].mxu0
    %1531 = vdwg.mxu0
    %1532 = vmax.xlane.f32.xlu0 %v1499
    %v1533 = vpop.xlane.xlu0 %1532
    %1534 = vmax.xlane.f32.xlu0 %v1504
    %v1535 = vpop.xlane.xlu0 %1534
    %1536 = vmax.xlane.f32.xlu0 %v1509
    %v1537 = vpop.xlane.xlu0 %1536
    %1538 = vmax.xlane.f32.xlu0 %v1514
    %v1539 = vpop.xlane.xlu0 %1538
    %1540 = vmax.xlane.f32.xlu0 %v1519
    %v1541 = vpop.xlane.xlu0 %1540
    %1542 = vmax.xlane.f32.xlu0 %v1524
    %v1543 = vpop.xlane.xlu0 %1542
    %1544 = vmax.xlane.f32.xlu0 %v1529
    %v1545 = vpop.xlane.xlu0 %1544
    %v1546 = vsub.f32 %v1499, %v1533
    %v1547 = vsub.f32 %v1504, %v1535
    %v1548 = vsub.f32 %v1509, %v1537
    %v1549 = vsub.f32 %v1514, %v1539
    %v1550 = vsub.f32 %v1519, %v1541
    %v1551 = vsub.f32 %v1524, %v1543
    %v1552 = vsub.f32 %v1529, %v1545
    %v1553 = vmul.f32 %v1546, 1.442695
    %v1554 = vpow.pop %v1553
    %v1555 = vmul.f32 %v1547, 1.442695
    %v1556 = vpow.pop %v1555
    %v1557 = vmul.f32 %v1548, 1.442695
    %v1558 = vpow.pop %v1557
    %v1559 = vmul.f32 %v1549, 1.442695
    %v1560 = vpow.pop %v1559
    %v1561 = vmul.f32 %v1550, 1.442695
    %v1562 = vpow.pop %v1561
    %v1563 = vmul.f32 %v1551, 1.442695
    %v1564 = vpow.pop %v1563
    %v1565 = vmul.f32 %v1552, 1.442695
    %v1566 = vpow.pop %v1565
    %1567 = vadd.xlane.f32.xlu0 %v1554
    %v1568 = vpop.xlane.xlu0 %1567
    %1569 = vadd.xlane.f32.xlu0 %v1556
    %v1570 = vpop.xlane.xlu0 %1569
    %1571 = vadd.xlane.f32.xlu0 %v1558
    %v1572 = vpop.xlane.xlu0 %1571
    %1573 = vadd.xlane.f32.xlu0 %v1560
    %v1574 = vpop.xlane.xlu0 %1573
    %1575 = vadd.xlane.f32.xlu0 %v1562
    %v1576 = vpop.xlane.xlu0 %1575
    %1577 = vadd.xlane.f32.xlu0 %v1564
    %v1578 = vpop.xlane.xlu0 %1577
    %1579 = vadd.xlane.f32.xlu0 %v1566
    %v1580 = vpop.xlane.xlu0 %1579
    %v1581 = vlog2.pop %v1568
    %v1582 = vmul.f32 %v1581, 0.6931472
    %v1583 = vlog2.pop %v1570
    %v1584 = vmul.f32 %v1583, 0.6931472
    %v1585 = vlog2.pop %v1572
    %v1586 = vmul.f32 %v1585, 0.6931472
    %v1587 = vlog2.pop %v1574
    %v1588 = vmul.f32 %v1587, 0.6931472
    %v1589 = vlog2.pop %v1576
    %v1590 = vmul.f32 %v1589, 0.6931472
    %v1591 = vlog2.pop %v1578
    %v1592 = vmul.f32 %v1591, 0.6931472
    %v1593 = vlog2.pop %v1580
    %v1594 = vmul.f32 %v1593, 0.6931472
    %v1595 = vsub.f32 %v1546, %v1582
    %v1596 = vsub.f32 %v1547, %v1584
    %v1597 = vsub.f32 %v1548, %v1586
    %v1598 = vsub.f32 %v1549, %v1588
    %v1599 = vsub.f32 %v1550, %v1590
    %v1600 = vsub.f32 %v1551, %v1592
    %v1601 = vsub.f32 %v1552, %v1594
    %1602 = vst [vmem:[#allocation2] sm:$0xff] %v1595
    %1603 = vst [vmem:[#allocation2 + $0x8] sm:$0xff] %v1596
    %1604 = vst [vmem:[#allocation2 + $0x10] sm:$0xff] %v1597
    %1605 = vst [vmem:[#allocation2 + $0x18] sm:$0xff] %v1598
    %1606 = vst [vmem:[#allocation2 + $0x20] sm:$0xff] %v1599
    %1607 = vst [vmem:[#allocation2 + $0x28] sm:$0xff] %v1600
    %1608 = vst [vmem:[#allocation2 + $0x30] sm:$0xff] %v1601
    // Predicated region
    $region38: #{tpu_custom_call.1} parent=1 // pred_check
      _
    $region39: #{tpu_custom_call.1} parent=1 // pred_check_branch
      %1610 = sbr.rel (0) target = $region41
    $region40: #{tpu_custom_call.1} parent=1 // pred_region
      %s1612 = ssub.s32 896, 896
      %1613 = vsyncadd [#allocation3], %s1612
      %s1614 = sshll.u32 [#allocation2], 4
      %s1615 = int_to_ptr.vmem [resolvable:$true] %s1614
      %1620 = dma.vmem_to_hbm [thread:$0]  %s1615, 896, %s9, [#allocation3], 128, 128, 8
    $region41: #{tpu_custom_call.1} parent=1 // pred_fallthru
      _
    // Predicated region
    $region42: #{tpu_custom_call.1} parent=1 // pred_check
      _
    $region43: #{tpu_custom_call.1} parent=1 // pred_check_branch
      %1622 = sbr.rel (0) target = $region45
    $region44: #{tpu_custom_call.1} parent=1 // pred_region
      %1623 = dma.done [#allocation3], 896
    $region45: #{tpu_custom_call.1} parent=1 // pred_fallthru
      _
    %1624 = vsyncpa [#allocation3], 1

</llo_original>
